<compile_context>
chip_gen: v7x
topology: tpu7x:2x2x1
jax: 0.10.0
libtpu: 0.0.40
codegen_flags: <defaults>
</compile_context>

<pallas_src>
import math
import functools

import jax
import jax.numpy as jnp
from jax import lax
from jax.experimental import pallas as pl
from jax.experimental.pallas import tpu as pltpu


def _round_up(v, mult):
    return ((v + mult - 1) // mult) * mult


def _const_index_map(ndim):
    def imap(bt):
        return (0,) * ndim
    return imap


# ---------------------------------------------------------------------------
# Kernels
# ---------------------------------------------------------------------------
def _fused_kernel(x_ref, w1_ref, w2_ref, bias_ref, o_ref, *, compute_dtype):
    """Small-config fast path: two dense MXU dots, output already in module order.

    x_ref   : (TB, n)        batch tile (original dtype; cast to bf16 in-kernel)
    w1_ref  : (n, K2)        k-block-diagonal stage-1 factor, K2 = J*k*b1
    w2_ref  : (K2, m_pad)    j-block-diagonal stage-2 factor, module column order,
                             zero-padded to a multiple of 128 lanes
    bias_ref: (1, m_pad)     f32 bias (zero padded)
    o_ref   : (TB, m_pad)    lane-dense output slab, module column order
    """
    x = x_ref[...].astype(compute_dtype)
    t = jnp.dot(x, w1_ref[...], preferred_element_type=jnp.float32)       # (TB, K2)
    out = jnp.dot(t.astype(compute_dtype), w2_ref[...],
                  preferred_element_type=jnp.float32) + bias_ref[...]     # (TB, m_pad)
    o_ref[...] = out.astype(o_ref.dtype)                                  # single store


def _blocked_kernel(x_ref, w1_ref, w2_ref, bias_ref, o_ref, *, compute_dtype):
    """General path: k-batched stage-1 (true sparsity over k) + fused stage-2.

    x_ref   : (k, TB, i)
    w1_ref  : (k, J*b1, i)        stage-1 factors (all J blocks fused along lanes)
    w2_ref  : (k, J*b1, m_pad)    per-k stage-2 factor, block-diag over j, module order
    bias_ref: (1, m_pad)
    o_ref   : (TB, m_pad)

    No lane concatenates / slices: the j-block selection lives in the zero structure
    of w2_ref, and the only reduction outside the MXU is a VPU sum over the leading
    k axis.
    """
    t = lax.dot_general(x_ref[...], w1_ref[...],
                        dimension_numbers=(((2,), (2,)), ((0,), (0,))),
                        preferred_element_type=jnp.float32)               # (k, TB, J*b1)
    o_parts = lax.dot_general(t.astype(compute_dtype), w2_ref[...],
                              dimension_numbers=(((2,), (1,)), ((0,), (0,))),
                              preferred_element_type=jnp.float32)         # (k, TB, m_pad)
    out = jnp.sum(o_parts, axis=0) + bias_ref[...]                        # VPU adds over k
    o_ref[...] = out.astype(o_ref.dtype)


# ---------------------------------------------------------------------------
# Wrapper
# ---------------------------------------------------------------------------
def blockdiag_butterfly_linear(x, w1_bfly, w2_bfly, bias, *, b1, b2,
                               compute_dtype=jnp.bfloat16):
    """JAX/Pallas port of BlockdiagButterflyLinear.forward."""
    x_shape = x.shape
    n = x_shape[-1]
    xf = x.reshape(-1, n)
    B = xf.shape[0]
    out_dtype = x.dtype

    k, jb1, i = w1_bfly.shape
    J, lb2, kb1 = w2_bfly.shape
    assert jb1 == J * b1 and kb1 == k * b1 and k * i == n
    l = lb2 // b2
    assert lb2 == l * b2
    m = J * lb2
    assert bias.shape == (m,)

    m_pad = _round_up(m, 128)          # lane-dense output stores (pad w2 cols + bias too)
    K2 = J * kb1

    cbytes = jnp.dtype(compute_dtype).itemsize
    obytes = jnp.dtype(out_dtype).itemsize
    xbytes = jnp.dtype(x.dtype).itemsize

    # ---- generation-aware VMEM policy (v7x: 64 MiB/TC; v5e/v6e: 128 MiB) ----
    try:
        vmem_cap = int(pltpu.get_tpu_info().vmem_capacity_bytes)
    except Exception:
        vmem_cap = 64 * 1024 * 1024                          # conservative (v7x) default
    if vmem_cap >= 100 * 1024 * 1024:                        # v5e / v6e class
        work_budget, limit_cap, max_tb = 80 << 20, 96 << 20, 1024
    else:                                                    # v7x class
        work_budget, limit_cap, max_tb = 40 << 20, 48 << 20, 512

    # ---- path selection ----
    w_fused_bytes = (n * K2 + K2 * m_pad) * cbytes + m_pad * 4
    w_blocked_bytes = (k * jb1 * i + k * jb1 * m_pad) * cbytes + m_pad * 4
    use_fast = (n <= 256 and kb1 <= 256 and m_pad <= 256
                and w_fused_bytes <= work_budget // 3)

    if use_fast:
        def est(tb):     # weights single-buffered (Buffered(1)); x/out double-buffered
            io = 2 * tb * n * xbytes + 2 * tb * m_pad * obytes
            live = tb * n * cbytes + tb * K2 * (4 + cbytes) + tb * m_pad * 4
            return io + live + w_fused_bytes
    else:
        def est(tb):
            io = 2 * k * tb * i * cbytes + 2 * tb * m_pad * obytes
            live = k * tb * jb1 * (4 + cbytes) + (k + 1) * tb * m_pad * 4
            return io + live + w_blocked_bytes

    # ---- batch-tile selection ----
    TB = min(max_tb, max(8, _round_up(B, 8)))
    while TB > 8 and est(TB) > work_budget:
        TB = max(8, _round_up(TB // 2, 8))
    # Keep >= 2 batch tiles whenever possible so v7x's two TensorCores both get work
    # (one extra grid step costs ~0.35us on single-core generations).
    if B >= 16 and pl.cdiv(B, TB) < 2:
        TB = max(8, (B // 2) // 8 * 8)
    Bp = _round_up(B, TB)
    num_bt = Bp // TB

    # Padded batch rows compute bias-only values that are sliced off below.
    xp = xf if Bp == B else jnp.pad(xf, ((0, Bp - B), (0, 0)))

    # ---- wrapper-side weight prep: module column order + lane padding pre-applied ---
    w1r = w1_bfly.reshape(k, J, b1, i)
    w2r = w2_bfly.reshape(J, l, b2, k, b1)
    eye_j = jnp.eye(J, dtype=w2_bfly.dtype)
    # w2m[kk, j, y, l, j', z] = w2[j, l*b2+z, kk*b1+y] * delta(j, j')
    # -> columns (l, j', z) are exactly the module's flat output order.
    w2m = jnp.einsum('jlzky,jJ->kjylJz', w2r, eye_j)
    bias_p = jnp.zeros((1, m_pad), jnp.float32).at[0, :m].set(bias.astype(jnp.float32))

    if use_fast:
        eye_k = jnp.eye(k, dtype=w1_bfly.dtype)
        # W1full[kk*i+ii, j*kb1 + kk'*b1 + y] = w1[kk, j*b1+y, ii] * delta(kk, kk')
        w1_t = (jnp.einsum('kjyi,kK->kijKy', w1r, eye_k)
                .reshape(n, K2).astype(compute_dtype))
        w2_t = jnp.zeros((K2, m_pad), compute_dtype).at[:, :m].set(
            jnp.transpose(w2m, (1, 0, 2, 3, 4, 5)).reshape(K2, m).astype(compute_dtype))
        x_t = xp                                          # cast to bf16 in-kernel (halves x HBM traffic)
        kernel = functools.partial(_fused_kernel, compute_dtype=compute_dtype)
        x_spec = pl.BlockSpec((TB, n), lambda bt: (bt, 0))
    else:
        # TODO(synk): for very large l*b2 the j-block-diagonal fused stage-2 wastes
        #             Jx MXU flops / w2 VMEM; a sparsity-preserving per-j stage-2
        #             with an in-kernel (j,l,z)->(l,j,z) epilogue permute would be
        #             the next refinement for such configs.
        x_t = xp.astype(compute_dtype).reshape(Bp, k, i).transpose(1, 0, 2)  # (k, Bp, i)
        w1_t = w1_bfly.astype(compute_dtype)                                  # (k, J*b1, i)
        w2_t = jnp.zeros((k, jb1, m_pad), compute_dtype).at[:, :, :m].set(
            w2m.reshape(k, jb1, m).astype(compute_dtype))
        kernel = functools.partial(_blocked_kernel, compute_dtype=compute_dtype)
        x_spec = pl.BlockSpec((k, TB, i), lambda bt: (0, bt, 0))

    vmem_limit = int(min(max(2 * est(TB), 32 << 20), limit_cap))

    def _run(single_buffer_weights):
        def const_spec(shape):
            imap = _const_index_map(len(shape))
            if single_buffer_weights:
                return pl.BlockSpec(shape, imap, pipeline_mode=pl.Buffered(1))
            return pl.BlockSpec(shape, imap)

        return pl.pallas_call(
            kernel,
            out_shape=jax.ShapeDtypeStruct((Bp, m_pad), out_dtype),
            grid_spec=pltpu.PrefetchScalarGridSpec(
                num_scalar_prefetch=0,
                grid=(num_bt,),
                in_specs=[
                    x_spec,                                   # batch tile, pipelined
                    const_spec(tuple(w1_t.shape)),            # VMEM-resident weights
                    const_spec(tuple(w2_t.shape)),
                    const_spec(tuple(bias_p.shape)),
                ],
                out_specs=pl.BlockSpec((TB, m_pad), lambda bt: (bt, 0)),
            ),
            compiler_params=pltpu.CompilerParams(
                dimension_semantics=("parallel",),
                vmem_limit_bytes=vmem_limit,
            ),
        )(x_t, w1_t, w2_t, bias_p)

    try:
        out_raw = _run(True)      # single-buffer the constant-index-map weight operands
    except Exception:
        out_raw = _run(False)     # fall back if Buffered(1) is rejected by this jax/Mosaic

    # Drop batch / lane padding (no-op when nothing was padded); output is already in
    # module column order so no HBM permutation pass is needed.
    out = out_raw[:B, :m]
    return out.reshape(x_shape[:-1] + (m,))


# ---------------------------------------------------------------------------
# Pure-JAX reference (f32) for verification
# ---------------------------------------------------------------------------
def _reference(x, w1_bfly, w2_bfly, bias, *, b1, b2):
    x_shape = x.shape
    n = x_shape[-1]
    xf = x.reshape(-1, n).astype(jnp.float32)
    k, jb1, i = w1_bfly.shape
    J, lb2, kb1 = w2_bfly.shape
    l = lb2 // b2
    xr = xf.reshape(-1, k, i)
    w1r = w1_bfly.reshape(k, J, b1, i).astype(jnp.float32)
    w2r = w2_bfly.reshape(J, l, b2, k, b1).astype(jnp.float32)
    out = jnp.einsum('bki,kjyi,jlzky->bljz', xr, w1r, w2r)
    out = out.reshape(xf.shape[0], J * lb2) + bias
    return out.reshape(x_shape[:-1] + (J * lb2,))


if __name__ == "__main__":
    # Module defaults (BlockdiagButterflyLinear), small features: 64 -> 64.
    in_features, out_features = 64, 64
    nblocks1, nblocks2, b1, b2 = 4, 4, 48, 1
    i = in_features // nblocks1          # 16
    l = out_features // nblocks2         # 16

    key = jax.random.PRNGKey(0)
    kw1, kw2, kb, kx = jax.random.split(key, 4)

    # Deterministic kaiming-uniform-like init (matches the parameter shapes of __init__).
    fan_in1 = (nblocks2 * b1) * i
    bound1 = 1.0 / math.sqrt(fan_in1)
    fan_in2 = nblocks1 * b1
    bound2 = 1.0 / math.sqrt(fan_in2)
    w1_bfly = jax.random.uniform(kw1, (nblocks1, nblocks2 * b1, i),
                                 jnp.float32, -bound1, bound1)
    w2_bfly = jax.random.uniform(kw2, (nblocks2, l * b2, nblocks1 * b1),
                                 jnp.float32, -bound2, bound2)
    bias = jax.random.uniform(kb, (out_features,), jnp.float32, -bound1, bound1)

    # Input with extra leading batch dims; flattened batch = 2*8 = 16.
    x = jax.random.normal(kx, (2, 8, in_features), jnp.float32)

    out = blockdiag_butterfly_linear(x, w1_bfly, w2_bfly, bias, b1=b1, b2=b2,
                                     compute_dtype=jnp.bfloat16)
    out = jax.block_until_ready(out)

    ref = jax.block_until_ready(_reference(x, w1_bfly, w2_bfly, bias, b1=b1, b2=b2))
    assert out.shape == (2, 8, out_features), out.shape
    # bf16 MXU inputs with f32 accumulation (double rounding between the two stages)
    # -> loose-but-safe tolerance vs the f32 reference.
    assert jnp.allclose(out, ref, rtol=2e-2, atol=2e-2), \
        float(jnp.max(jnp.abs(out - ref)))

    print("KERNEL_OK")
</pallas_src>

<mosaic_0001>
module attributes {stable_mosaic.version = 11 : i64} {
  func.func @_fused_kernel(%arg0: i32, %arg1: memref<8x64xf32, #tpu.memory_space<vmem>>, %arg2: memref<64x768xbf16, #tpu.memory_space<vmem>>, %arg3: memref<768x128xbf16, #tpu.memory_space<vmem>>, %arg4: memref<1x128xf32, #tpu.memory_space<vmem>>, %arg5: memref<8x128xf32, #tpu.memory_space<vmem>>) attributes {dimension_semantics = [#tpu.dimension_semantics<parallel>], iteration_bounds = array<i64: 2>, scalar_prefetch = 0 : i64, scratch_operands = 0 : i64, tpu.core_type = #tpu.core_type<tc>, window_params = [{transform_indices = @transform_0, window_bounds = array<i64: 8, 64>}, {pipeline_mode = #tpu.pipeline_mode<synchronous>, transform_indices = @transform_1, window_bounds = array<i64: 64, 768>}, {pipeline_mode = #tpu.pipeline_mode<synchronous>, transform_indices = @transform_2, window_bounds = array<i64: 768, 128>}, {pipeline_mode = #tpu.pipeline_mode<synchronous>, transform_indices = @transform_3, window_bounds = array<i64: 1, 128>}, {transform_indices = @transform_4, window_bounds = array<i64: 8, 128>}]} {
    %c0 = arith.constant 0 : index
    %c0_0 = arith.constant 0 : index
    %0 = vector.load %arg1[%c0, %c0_0] : memref<8x64xf32, #tpu.memory_space<vmem>>, vector<8x64xf32>
    %1 = arith.truncf %0 : vector<8x64xf32> to vector<8x64xbf16>
    %c0_1 = arith.constant 0 : index
    %c0_2 = arith.constant 0 : index
    %2 = vector.load %arg2[%c0_1, %c0_2] : memref<64x768xbf16, #tpu.memory_space<vmem>>, vector<64x768xbf16>
    %cst = arith.constant dense<0.000000e+00> : vector<8x768xf32>
    %3 = tpu.matmul %1, %2, %cst {dimension_numbers = #tpu.dot_dimension_numbers<[1], [0], [0], [1], [0, 0, 1, 1], [], []>} : vector<8x64xbf16>, vector<64x768xbf16>, vector<8x768xf32> -> vector<8x768xf32>
    %4 = arith.truncf %3 : vector<8x768xf32> to vector<8x768xbf16>
    %c0_3 = arith.constant 0 : index
    %c0_4 = arith.constant 0 : index
    %5 = vector.load %arg3[%c0_3, %c0_4] : memref<768x128xbf16, #tpu.memory_space<vmem>>, vector<768x128xbf16>
    %cst_5 = arith.constant dense<0.000000e+00> : vector<8x128xf32>
    %6 = tpu.matmul %4, %5, %cst_5 {dimension_numbers = #tpu.dot_dimension_numbers<[1], [0], [0], [1], [0, 0, 1, 1], [], []>} : vector<8x768xbf16>, vector<768x128xbf16>, vector<8x128xf32> -> vector<8x128xf32>
    %c0_6 = arith.constant 0 : index
    %c0_7 = arith.constant 0 : index
    %7 = vector.load %arg4[%c0_6, %c0_7] : memref<1x128xf32, #tpu.memory_space<vmem>>, vector<1x128xf32>
    %8 = vector.broadcast %7 : vector<1x128xf32> to vector<8x128xf32>
    %9 = arith.addf %6, %8 : vector<8x128xf32>
    %c0_8 = arith.constant 0 : index
    %c0_9 = arith.constant 0 : index
    %10 = vector.load %arg5[%c0_8, %c0_9] : memref<8x128xf32, #tpu.memory_space<vmem>>, vector<8x128xf32>
    tpu.vector_store %arg5[%c0_8, %c0_9], %9 {strides = array<i32>} : memref<8x128xf32, #tpu.memory_space<vmem>>, vector<8x128xf32>,
    return
  }
  func.func @transform_0(%arg0: i32) -> (i32, i32) {
    %c0_i32 = arith.constant 0 : i32
    %c0_i32_0 = arith.constant 0 : i32
    return %arg0, %c0_i32 : i32, i32
  }
  func.func @transform_1(%arg0: i32) -> (i32, i32) {
    %c0_i32 = arith.constant 0 : i32
    %c0_i32_0 = arith.constant 0 : i32
    %c0_i32_1 = arith.constant 0 : i32
    return %c0_i32, %c0_i32_0 : i32, i32
  }
  func.func @transform_2(%arg0: i32) -> (i32, i32) {
    %c0_i32 = arith.constant 0 : i32
    %c0_i32_0 = arith.constant 0 : i32
    %c0_i32_1 = arith.constant 0 : i32
    return %c0_i32, %c0_i32_0 : i32, i32
  }
  func.func @transform_3(%arg0: i32) -> (i32, i32) {
    %c0_i32 = arith.constant 0 : i32
    %c0_i32_0 = arith.constant 0 : i32
    %c0_i32_1 = arith.constant 0 : i32
    return %c0_i32, %c0_i32_0 : i32, i32
  }
  func.func @transform_4(%arg0: i32) -> (i32, i32) {
    %c0_i32 = arith.constant 0 : i32
    %c0_i32_0 = arith.constant 0 : i32
    return %arg0, %c0_i32 : i32, i32
  }
}

module attributes {stable_mosaic.version = 11 : i64} {
  func.func @_fused_kernel(%arg0: i32, %arg1: memref<8x64xf32, #tpu.memory_space<vmem>>, %arg2: memref<64x768xbf16, #tpu.memory_space<vmem>>, %arg3: memref<768x128xbf16, #tpu.memory_space<vmem>>, %arg4: memref<1x128xf32, #tpu.memory_space<vmem>>, %arg5: memref<8x128xf32, #tpu.memory_space<vmem>>) attributes {dimension_semantics = [#tpu.dimension_semantics<parallel>], iteration_bounds = array<i64: 2>, scalar_prefetch = 0 : i64, scratch_operands = 0 : i64, tpu.core_type = #tpu.core_type<tc>, window_params = [{transform_indices = @transform_0, window_bounds = array<i64: 8, 64>}, {pipeline_mode = #tpu.pipeline_mode<synchronous>, transform_indices = @transform_1, window_bounds = array<i64: 64, 768>}, {pipeline_mode = #tpu.pipeline_mode<synchronous>, transform_indices = @transform_2, window_bounds = array<i64: 768, 128>}, {pipeline_mode = #tpu.pipeline_mode<synchronous>, transform_indices = @transform_3, window_bounds = array<i64: 1, 128>}, {transform_indices = @transform_4, window_bounds = array<i64: 8, 128>}]} {
    %c0 = arith.constant 0 : index
    %c0_0 = arith.constant 0 : index
    %0 = vector.load %arg1[%c0, %c0_0] : memref<8x64xf32, #tpu.memory_space<vmem>>, vector<8x64xf32>
    %1 = arith.truncf %0 : vector<8x64xf32> to vector<8x64xbf16>
    %c0_1 = arith.constant 0 : index
    %c0_2 = arith.constant 0 : index
    %2 = vector.load %arg2[%c0_1, %c0_2] : memref<64x768xbf16, #tpu.memory_space<vmem>>, vector<64x768xbf16>
    %cst = arith.constant dense<0.000000e+00> : vector<8x768xf32>
    %3 = tpu.matmul %1, %2, %cst {dimension_numbers = #tpu.dot_dimension_numbers<[1], [0], [0], [1], [0, 0, 1, 1], [], []>} : vector<8x64xbf16>, vector<64x768xbf16>, vector<8x768xf32> -> vector<8x768xf32>
    %4 = arith.truncf %3 : vector<8x768xf32> to vector<8x768xbf16>
    %c0_3 = arith.constant 0 : index
    %c0_4 = arith.constant 0 : index
    %5 = vector.load %arg3[%c0_3, %c0_4] : memref<768x128xbf16, #tpu.memory_space<vmem>>, vector<768x128xbf16>
    %cst_5 = arith.constant dense<0.000000e+00> : vector<8x128xf32>
    %6 = tpu.matmul %4, %5, %cst_5 {dimension_numbers = #tpu.dot_dimension_numbers<[1], [0], [0], [1], [0, 0, 1, 1], [], []>} : vector<8x768xbf16>, vector<768x128xbf16>, vector<8x128xf32> -> vector<8x128xf32>
    %c0_6 = arith.constant 0 : index
    %c0_7 = arith.constant 0 : index
    %7 = vector.load %arg4[%c0_6, %c0_7] : memref<1x128xf32, #tpu.memory_space<vmem>>, vector<1x128xf32>
    %8 = vector.broadcast %7 : vector<1x128xf32> to vector<8x128xf32>
    %9 = arith.addf %6, %8 : vector<8x128xf32>
    %c0_8 = arith.constant 0 : index
    %c0_9 = arith.constant 0 : index
    %10 = vector.load %arg5[%c0_8, %c0_9] : memref<8x128xf32, #tpu.memory_space<vmem>>, vector<8x128xf32>
    tpu.vector_store %arg5[%c0_8, %c0_9], %9 {strides = array<i32>} : memref<8x128xf32, #tpu.memory_space<vmem>>, vector<8x128xf32>,
    return
  }
  func.func @transform_0(%arg0: i32) -> (i32, i32) {
    %c0_i32 = arith.constant 0 : i32
    %c0_i32_0 = arith.constant 0 : i32
    return %arg0, %c0_i32 : i32, i32
  }
  func.func @transform_1(%arg0: i32) -> (i32, i32) {
    %c0_i32 = arith.constant 0 : i32
    %c0_i32_0 = arith.constant 0 : i32
    %c0_i32_1 = arith.constant 0 : i32
    return %c0_i32, %c0_i32_0 : i32, i32
  }
  func.func @transform_2(%arg0: i32) -> (i32, i32) {
    %c0_i32 = arith.constant 0 : i32
    %c0_i32_0 = arith.constant 0 : i32
    %c0_i32_1 = arith.constant 0 : i32
    return %c0_i32, %c0_i32_0 : i32, i32
  }
  func.func @transform_3(%arg0: i32) -> (i32, i32) {
    %c0_i32 = arith.constant 0 : i32
    %c0_i32_0 = arith.constant 0 : i32
    %c0_i32_1 = arith.constant 0 : i32
    return %c0_i32, %c0_i32_0 : i32, i32
  }
  func.func @transform_4(%arg0: i32) -> (i32, i32) {
    %c0_i32 = arith.constant 0 : i32
    %c0_i32_0 = arith.constant 0 : i32
    return %arg0, %c0_i32 : i32, i32
  }
}

</mosaic_0001>

<llo_original>
// kernel: tpu_custom_call.1
$region0: #{tpu_custom_call.1}
  #allocation0 [shape = 'u32[]', space=smem, size = 0x4, offset = 0x4, fixed_abs, tag = 'smem constant byte address 0x4 - core index']
  #allocation1 [shape = 'u32[144,128]{1,0:T(1,128)}', space=vmem, size = 0x12000, scoped, tag = 'internal scratch']
  %s0 = inlined_call_operand.hbm [shape: f32[16,64], index: 0, kind: input, shape index: {}]
  %s1 = inlined_call_operand.hbm [shape: bf16[64,768], index: 1, kind: input, shape index: {}]
  %s2 = inlined_call_operand.hbm [shape: bf16[768,128], index: 2, kind: input, shape index: {}]
  %s3 = inlined_call_operand.vmem [shape: f32[1,128], index: 3, kind: input, shape index: {}]
  %s4 = inlined_call_operand.hbm [shape: f32[16,128], index: 4, kind: output, shape index: {}]
  %s5 = sld [smem:[#allocation0]]
  $region61: #{tpu_custom_call.1} parent=0
    _
  %s7 = ssub.s32 1, %s5
  %s8 = scalar_select 0, %s7, %s5
  $region1: #{tpu_custom_call.1} parent=0
    #allocation2 [shape = 'u8[8192]{0}', space=vmem, size = 0x2000, scoped, tag = 'input window, operand 0']
    #allocation3 [shape = 's32[2]{0}', space=sflag, size = 0x8, scoped, tag = 'scoped memory for tpu_custom_call.1']
    #allocation4 [shape = 's32[2]{0}', space=sflag, size = 0x8, scoped, tag = 'scoped memory for tpu_custom_call.1']
    #allocation5 [shape = 'u8[98304]{0}', space=vmem, size = 0x18000, scoped, tag = 'input window, operand 1, single buffered']
    #allocation6 [shape = 's32[1]{0}', space=sflag, size = 0x4, scoped, tag = 'scoped memory for tpu_custom_call.1']
    #allocation7 [shape = 'u8[196608]{0}', space=vmem, size = 0x30000, scoped, tag = 'input window, operand 2, single buffered']
    #allocation8 [shape = 'u8[8192]{0}', space=vmem, size = 0x2000, scoped, tag = 'output window, operand 0']
    %9 = vsyncpa [#allocation3], 0
    %s10 = scalar_lea.sflag [#allocation3], 1
    %11 = vsyncpa %s10, 0
    %12 = vsyncpa [#allocation6], 0
    %13 = vsyncpa [#allocation4], 0
    %s14 = scalar_lea.sflag [#allocation4], 1
    %15 = vsyncpa %s14, 0
    loop: start=0, step=1, limit=4
    $region2: #{tpu_custom_call.1} parent=1 // loop_pre_header
      _
    $region3: #{tpu_custom_call.1} parent=1 // loop_header
      %s17 = sphi 0, %s21
      %p18 = scmp.ge.s32.totalorder %s17, 4
      %s27 = sphi 0, %s29
      %s30 = sphi 0, %s27
      %s31 = sphi 0, %s30
      %s47 = sphi 0, %s31
      %s51 = sphi 0, %s51
      %s53 = sphi 0, %s51
      %s54 = sphi 0, %s53
      %s68 = sphi 0, %s54
      %s72 = sphi 0, %s72
      %s74 = sphi 0, %s72
      %s75 = sphi 0, %s74
      %s89 = sphi 0, %s75
      %s93 = sphi 0, %s93
      %s95 = sphi 0, %s93
      %s96 = sphi 0, %s95
      %s110 = sphi 0, %s96
      %s116 = sphi 0, %s118
      %s119 = sphi 0, %s116
      %s120 = sphi 0, %s119
      %s136 = sphi 0, %s120
    $region4: #{tpu_custom_call.1} parent=1 // loop_header_branch
      %20 = sbr.rel (%p18) target = $region8
    $region5: #{tpu_custom_call.1} parent=1 // loop_body
      %s22 = ssub.s32 %s17, 1
      %s23 = ssub.s32 %s17, 2
      %s24 = sadd.s32 %s17, 1
      %s25 = ssub.s32 %s17, %s24
      %p26 = scmp.eq.s32.totalorder %s25, 0
      %s28 = sadd.s32 %s27, 1
      %s29 = scalar_select %p26, %s27, %s28
      %p32 = pneg %p26
      %p33 = scmp.eq.s32.totalorder %s17, 1
      %p34 = por %p32, %p33
      %p35 = scmp.ne.s32.totalorder %s27, %s30
      %p36 = scmp.eq.s32.totalorder %s17, 0
      %p37 = por %p35, %p36
      %p38 = scmp.ne.s32.totalorder %s27, %s30
      %p39 = scmp.eq.s32.totalorder %s22, 1
      %p40 = por %p38, %p39
      %p41 = scmp.ne.s32.totalorder %s30, %s31
      %p42 = scmp.eq.s32.totalorder %s22, 0
      %p43 = por %p41, %p42
      %p44 = scmp.ne.s32.totalorder %s30, %s31
      %p45 = scmp.eq.s32.totalorder %s23, 1
      %p46 = por %p44, %p45
      %p48 = scmp.ne.s32.totalorder %s31, %s47
      %p49 = scmp.eq.s32.totalorder %s23, 0
      %p50 = por %p48, %p49
      %s52 = sadd.s32 %s51, 1
      %p55 = scmp.eq.s32.totalorder %s17, 1
      %p56 = scmp.ne.s32.totalorder %s51, %s53
      %p57 = scmp.eq.s32.totalorder %s17, 0
      %p58 = por %p56, %p57
      %p59 = scmp.ne.s32.totalorder %s51, %s53
      %p60 = scmp.eq.s32.totalorder %s22, 1
      %p61 = por %p59, %p60
      %p62 = scmp.ne.s32.totalorder %s53, %s54
      %p63 = scmp.eq.s32.totalorder %s22, 0
      %p64 = por %p62, %p63
      %p65 = scmp.ne.s32.totalorder %s53, %s54
      %p66 = scmp.eq.s32.totalorder %s23, 1
      %p67 = por %p65, %p66
      %p69 = scmp.ne.s32.totalorder %s54, %s68
      %p70 = scmp.eq.s32.totalorder %s23, 0
      %p71 = por %p69, %p70
      %s73 = sadd.s32 %s72, 1
      %p76 = scmp.eq.s32.totalorder %s17, 1
      %p77 = scmp.ne.s32.totalorder %s72, %s74
      %p78 = scmp.eq.s32.totalorder %s17, 0
      %p79 = por %p77, %p78
      %p80 = scmp.ne.s32.totalorder %s72, %s74
      %p81 = scmp.eq.s32.totalorder %s22, 1
      %p82 = por %p80, %p81
      %p83 = scmp.ne.s32.totalorder %s74, %s75
      %p84 = scmp.eq.s32.totalorder %s22, 0
      %p85 = por %p83, %p84
      %p86 = scmp.ne.s32.totalorder %s74, %s75
      %p87 = scmp.eq.s32.totalorder %s23, 1
      %p88 = por %p86, %p87
      %p90 = scmp.ne.s32.totalorder %s75, %s89
      %p91 = scmp.eq.s32.totalorder %s23, 0
      %p92 = por %p90, %p91
      %s94 = sadd.s32 %s93, 1
      %p97 = scmp.eq.s32.totalorder %s17, 1
      %p98 = scmp.ne.s32.totalorder %s93, %s95
      %p99 = scmp.eq.s32.totalorder %s17, 0
      %p100 = por %p98, %p99
      %p101 = scmp.ne.s32.totalorder %s93, %s95
      %p102 = scmp.eq.s32.totalorder %s22, 1
      %p103 = por %p101, %p102
      %p104 = scmp.ne.s32.totalorder %s95, %s96
      %p105 = scmp.eq.s32.totalorder %s22, 0
      %p106 = por %p104, %p105
      %p107 = scmp.ne.s32.totalorder %s95, %s96
      %p108 = scmp.eq.s32.totalorder %s23, 1
      %p109 = por %p107, %p108
      %p111 = scmp.ne.s32.totalorder %s96, %s110
      %p112 = scmp.eq.s32.totalorder %s23, 0
      %p113 = por %p111, %p112
      %s114 = ssub.s32 %s17, %s24
      %p115 = scmp.eq.s32.totalorder %s114, 0
      %s117 = sadd.s32 %s116, 1
      %s118 = scalar_select %p115, %s116, %s117
      %p121 = pneg %p115
      %p122 = scmp.eq.s32.totalorder %s17, 1
      %p123 = por %p121, %p122
      %p124 = scmp.ne.s32.totalorder %s116, %s119
      %p125 = scmp.eq.s32.totalorder %s17, 0
      %p126 = por %p124, %p125
      %p127 = scmp.ne.s32.totalorder %s116, %s119
      %p128 = scmp.eq.s32.totalorder %s22, 1
      %p129 = por %p127, %p128
      %p130 = scmp.ne.s32.totalorder %s119, %s120
      %p131 = scmp.eq.s32.totalorder %s22, 0
      %p132 = por %p130, %p131
      %p133 = scmp.ne.s32.totalorder %s119, %s120
      %p134 = scmp.eq.s32.totalorder %s23, 1
      %p135 = por %p133, %p134
      %p137 = scmp.ne.s32.totalorder %s120, %s136
      %p138 = scmp.eq.s32.totalorder %s23, 0
      %p139 = por %p137, %p138
      %p140 = scmp.le.s32.totalorder 1, %s17
      %p141 = scmp.lt.s32.totalorder %s17, 3
      %p142 = pnand %p140, %p141
      %p143 = pneg %p142
      // Predicated region
      $region9: #{tpu_custom_call.1} parent=5 // pred_check
        _
      $region10: #{tpu_custom_call.1} parent=5 // pred_check_branch
        %145 = sbr.rel (%p142) target = $region12
      $region11: #{tpu_custom_call.1} parent=5 // pred_region
        %s146 = ssub.s32 %s17, 1
        // Predicated region
        $region13: #{tpu_custom_call.1} parent=11 // pred_check
          %p147 = pneg %p64
        $region14: #{tpu_custom_call.1} parent=11 // pred_check_branch
          %149 = sbr.rel (%p147) target = $region16
        $region15: #{tpu_custom_call.1} parent=11 // pred_region
          %s151 = ssub.s32 3072, 3072
          %152 = vsyncadd [#allocation6], %s151
          %s153 = sshll.u32 [#allocation5], 4
          %s154 = int_to_ptr.vmem [resolvable:$true] %s153
          %159 = dma.hbm_to_vmem [thread:$0]  %s1, 3072, %s154, [#allocation6], 384, 384, 24
        $region16: #{tpu_custom_call.1} parent=11 // pred_fallthru
          _
        // Predicated region
        $region17: #{tpu_custom_call.1} parent=11 // pred_check
          %p160 = pneg %p85
        $region18: #{tpu_custom_call.1} parent=11 // pred_check_branch
          %162 = sbr.rel (%p160) target = $region20
        $region19: #{tpu_custom_call.1} parent=11 // pred_region
          %s164 = ssub.s32 6144, 6144
          %165 = vsyncadd [#allocation6], %s164
          %s166 = sshll.u32 [#allocation7], 4
          %s167 = int_to_ptr.vmem [resolvable:$true] %s166
          %172 = dma.hbm_to_vmem [thread:$0]  %s2, 6144, %s167, [#allocation6], 64, 64, 4
        $region20: #{tpu_custom_call.1} parent=11 // pred_fallthru
          _
        // Predicated region
        $region21: #{tpu_custom_call.1} parent=11 // pred_check
          %p173 = pneg %p106
        $region22: #{tpu_custom_call.1} parent=11 // pred_check_branch
          %175 = sbr.rel (%p173) target = $region24
        $region23: #{tpu_custom_call.1} parent=11 // pred_region
          _
        $region24: #{tpu_custom_call.1} parent=11 // pred_fallthru
          _
      $region12: #{tpu_custom_call.1} parent=5 // pred_fallthru
        _
      %p176 = scmp.lt.s32.totalorder %s17, 2
      // Predicated region
      $region25: #{tpu_custom_call.1} parent=5 // pred_check
        %p177 = pneg %p176
      $region26: #{tpu_custom_call.1} parent=5 // pred_check_branch
        %179 = sbr.rel (%p177) target = $region28
      $region27: #{tpu_custom_call.1} parent=5 // pred_region
        // Predicated region
        $region29: #{tpu_custom_call.1} parent=27 // pred_check
          %p180 = pneg %p37
        $region30: #{tpu_custom_call.1} parent=27 // pred_check_branch
          %182 = sbr.rel (%p180) target = $region32
        $region31: #{tpu_custom_call.1} parent=27 // pred_region
          %s183 = sand.u32 %s27, 1
          %s184 = scalar_lea.sflag [#allocation3], %s183
          %s185 = sand.u32 %s27, 1
          %s186 = smul.addr %s185, 8
          %s187 = scalar_lea.vmem [#allocation2], %s186
          %s189 = ssub.s32 128, 128
          %190 = vsyncadd %s184, %s189
          %s191 = smul.addr %s17, 128
          %s192 = scalar_lea.hbm %s0, %s191
          %s194 = sshll.u32 %s187, 4
          %s195 = int_to_ptr.vmem [resolvable:$true] %s194
          %197 = dma.hbm_to_vmem [thread:$0]  %s192, 128, %s195, %s184
        $region32: #{tpu_custom_call.1} parent=27 // pred_fallthru
          _
      $region28: #{tpu_custom_call.1} parent=5 // pred_fallthru
        _
      %p198 = scmp.le.s32.totalorder 1, %s17
      %p199 = scmp.lt.s32.totalorder %s17, 3
      %p200 = pnand %p198, %p199
      %p201 = pneg %p200
      // Predicated region
      $region33: #{tpu_custom_call.1} parent=5 // pred_check
        _
      $region34: #{tpu_custom_call.1} parent=5 // pred_check_branch
        %203 = sbr.rel (%p200) target = $region36
      $region35: #{tpu_custom_call.1} parent=5 // pred_region
        %s204 = ssub.s32 %s17, 1
        %s205 = sand.u32 %s30, 1
        %s206 = scalar_lea.sflag [#allocation3], %s205
        %s207 = sand.u32 %s30, 1
        %s208 = smul.addr %s207, 8
        %s209 = scalar_lea.vmem [#allocation2], %s208
        // Predicated region
        $region37: #{tpu_custom_call.1} parent=35 // pred_check
          %p210 = pneg %p43
        $region38: #{tpu_custom_call.1} parent=35 // pred_check_branch
          %212 = sbr.rel (%p210) target = $region40
        $region39: #{tpu_custom_call.1} parent=35 // pred_region
          %213 = dma.done %s206, 128
        $region40: #{tpu_custom_call.1} parent=35 // pred_fallthru
          _
        // Predicated region
        $region41: #{tpu_custom_call.1} parent=35 // pred_check
          %p214 = pneg %p64
        $region42: #{tpu_custom_call.1} parent=35 // pred_check_branch
          %216 = sbr.rel (%p214) target = $region44
        $region43: #{tpu_custom_call.1} parent=35 // pred_region
          %217 = dma.done [#allocation6], 3072
        $region44: #{tpu_custom_call.1} parent=35 // pred_fallthru
          _
        // Predicated region
        $region45: #{tpu_custom_call.1} parent=35 // pred_check
          %p218 = pneg %p85
        $region46: #{tpu_custom_call.1} parent=35 // pred_check_branch
          %220 = sbr.rel (%p218) target = $region48
        $region47: #{tpu_custom_call.1} parent=35 // pred_region
          %221 = dma.done [#allocation6], 6144
        $region48: #{tpu_custom_call.1} parent=35 // pred_fallthru
          _
        %s222 = sand.u32 %s30, 1
        %s223 = scalar_lea.sflag [#allocation3], %s222
        %s224 = sand.u32 %s30, 1
        %s225 = smul.addr %s224, 8
        %s226 = scalar_lea.vmem [#allocation2], %s225
        %p227 = pneg %p43
        %p228 = pneg %p40
        %p229 = pneg %p64
        %p230 = pneg %p61
        %p231 = pneg %p85
        %p232 = pneg %p82
        %p233 = pneg %p106
        %p234 = pneg %p103
        %p235 = pneg %p132
        %p236 = pneg %p129
        %s237 = sand.u32 %s119, 1
        %s238 = scalar_lea.sflag [#allocation4], %s237
        %s239 = sand.u32 %s119, 1
        %s240 = smul.addr %s239, 8
        %s241 = scalar_lea.vmem [#allocation8], %s240
        %v243 = vld [vmem:[%s209] sm:$0xff]
        %v244 = vpack.c.bf16 %v243, %v243
        %v245 = vld [vmem:[#allocation5] sm:$0xff]
        %v246 = vld [vmem:[#allocation5 + $0x8] sm:$0xff]
        %v247 = vld [vmem:[#allocation5 + $0x10] sm:$0xff]
        %v248 = vld [vmem:[#allocation5 + $0x18] sm:$0xff]
        %v249 = vld [vmem:[#allocation5 + $0x20] sm:$0xff]
        %v250 = vld [vmem:[#allocation5 + $0x28] sm:$0xff]
        %v251 = vld [vmem:[#allocation5 + $0x30] sm:$0xff]
        %v252 = vld [vmem:[#allocation5 + $0x38] sm:$0xff]
        %v253 = vld [vmem:[#allocation5 + $0x40] sm:$0xff]
        %v254 = vld [vmem:[#allocation5 + $0x48] sm:$0xff]
        %v255 = vld [vmem:[#allocation5 + $0x50] sm:$0xff]
        %v256 = vld [vmem:[#allocation5 + $0x58] sm:$0xff]
        %v257 = vld [vmem:[#allocation5 + $0x60] sm:$0xff]
        %v258 = vld [vmem:[#allocation5 + $0x68] sm:$0xff]
        %v259 = vld [vmem:[#allocation5 + $0x70] sm:$0xff]
        %v260 = vld [vmem:[#allocation5 + $0x78] sm:$0xff]
        %v261 = vld [vmem:[#allocation5 + $0x80] sm:$0xff]
        %v262 = vld [vmem:[#allocation5 + $0x88] sm:$0xff]
        %v263 = vld [vmem:[#allocation5 + $0x90] sm:$0xff]
        %v264 = vld [vmem:[#allocation5 + $0x98] sm:$0xff]
        %v265 = vld [vmem:[#allocation5 + $0xa0] sm:$0xff]
        %v266 = vld [vmem:[#allocation5 + $0xa8] sm:$0xff]
        %v267 = vld [vmem:[#allocation5 + $0xb0] sm:$0xff]
        %v268 = vld [vmem:[#allocation5 + $0xb8] sm:$0xff]
        %v293 = vunpack.c.l.b16 %v245
        %v294 = vunpack.c.h.b16 %v245
        %v295 = vunpack.c.l.b16 %v246
        %v296 = vunpack.c.h.b16 %v246
        %v297 = vunpack.c.l.b16 %v247
        %v298 = vunpack.c.h.b16 %v247
        %v299 = vunpack.c.l.b16 %v248
        %v300 = vunpack.c.h.b16 %v248
        %v301 = vunpack.c.l.b16 %v249
        %v302 = vunpack.c.h.b16 %v249
        %v303 = vunpack.c.l.b16 %v250
        %v304 = vunpack.c.h.b16 %v250
        %v305 = vunpack.c.l.b16 %v251
        %v306 = vunpack.c.h.b16 %v251
        %v307 = vunpack.c.l.b16 %v252
        %v308 = vunpack.c.h.b16 %v252
        %v309 = vunpack.c.l.b16 %v253
        %v310 = vunpack.c.h.b16 %v253
        %v311 = vunpack.c.l.b16 %v254
        %v312 = vunpack.c.h.b16 %v254
        %v313 = vunpack.c.l.b16 %v255
        %v314 = vunpack.c.h.b16 %v255
        %v315 = vunpack.c.l.b16 %v256
        %v316 = vunpack.c.h.b16 %v256
        %v317 = vunpack.c.l.b16 %v257
        %v318 = vunpack.c.h.b16 %v257
        %v319 = vunpack.c.l.b16 %v258
        %v320 = vunpack.c.h.b16 %v258
        %v321 = vunpack.c.l.b16 %v259
        %v322 = vunpack.c.h.b16 %v259
        %v323 = vunpack.c.l.b16 %v260
        %v324 = vunpack.c.h.b16 %v260
        %v325 = vunpack.c.l.b16 %v261
        %v326 = vunpack.c.h.b16 %v261
        %v327 = vunpack.c.l.b16 %v262
        %v328 = vunpack.c.h.b16 %v262
        %v329 = vunpack.c.l.b16 %v263
        %v330 = vunpack.c.h.b16 %v263
        %v331 = vunpack.c.l.b16 %v264
        %v332 = vunpack.c.h.b16 %v264
        %v333 = vunpack.c.l.b16 %v265
        %v334 = vunpack.c.h.b16 %v265
        %v335 = vunpack.c.l.b16 %v266
        %v336 = vunpack.c.h.b16 %v266
        %v337 = vunpack.c.l.b16 %v267
        %v338 = vunpack.c.h.b16 %v267
        %v339 = vunpack.c.l.b16 %v268
        %v340 = vunpack.c.h.b16 %v268
        %v341 = vpack.c.b16 %v299, %v293
        %v342 = vpack.c.b16 %v300, %v294
        %v343 = vpack.c.b16 %v301, %v295
        %v344 = vpack.c.b16 %v302, %v296
        %v345 = vpack.c.b16 %v303, %v297
        %v346 = vpack.c.b16 %v304, %v298
        %v347 = vpack.c.b16 %v311, %v305
        %v348 = vpack.c.b16 %v312, %v306
        %v349 = vpack.c.b16 %v313, %v307
        %v350 = vpack.c.b16 %v314, %v308
        %v351 = vpack.c.b16 %v315, %v309
        %v352 = vpack.c.b16 %v316, %v310
        %v353 = vpack.c.b16 %v323, %v317
        %v354 = vpack.c.b16 %v324, %v318
        %v355 = vpack.c.b16 %v325, %v319
        %v356 = vpack.c.b16 %v326, %v320
        %v357 = vpack.c.b16 %v327, %v321
        %v358 = vpack.c.b16 %v328, %v322
        %v359 = vpack.c.b16 %v335, %v329
        %v360 = vpack.c.b16 %v336, %v330
        %v361 = vpack.c.b16 %v337, %v331
        %v362 = vpack.c.b16 %v338, %v332
        %v363 = vpack.c.b16 %v339, %v333
        %v364 = vpack.c.b16 %v340, %v334
        %vm389 = vcmask 523264
        %v391 = vsel %vm389, %v244, 0
        %393 = vmatprep.subr.bf16.mxu0 %v342
        %394 = vmatpush1.bf16.msra.mxu0 %v341
        %395 = vmatprep.subr.bf16.mxu0 %v348
        %396 = vmatpush1.bf16.msra.mxu0 %v347
        %397 = vmatprep.subr.bf16.mxu0 %v354
        %398 = vmatpush1.bf16.msra.mxu0 %v353
        %399 = vmatprep.subr.bf16.mxu0 %v360
        %400 = vmatpush1.bf16.msra.mxu0 %v359
        %401 = vmatprep.subr.bf16.mxu0 0
        %402 = vmatpush1.bf16.msra.mxu0 0
        %403 = vmatprep.subr.bf16.mxu0 0
        %404 = vmatpush1.bf16.msra.mxu0 0
        %405 = vmatprep.subr.bf16.mxu0 0
        %406 = vmatpush1.bf16.msra.mxu0 0
        %407 = vmatprep.subr.bf16.mxu0 0
        %408 = vmatpush1.bf16.msra.mxu0 0
        %409 = vmatprep.subr.bf16.mxu0 0
        %410 = vmatpush1.bf16.msra.mxu0 0
        %411 = vmatprep.subr.bf16.mxu0 0
        %412 = vmatpush1.bf16.msra.mxu0 0
        %413 = vmatprep.subr.bf16.mxu0 0
        %414 = vmatpush1.bf16.msra.mxu0 0
        %415 = vmatprep.subr.bf16.mxu0 0
        %416 = vmatpush1.bf16.msra.mxu0 0
        %417 = vmatprep.subr.bf16.mxu0 0
        %418 = vmatpush1.bf16.msra.mxu0 0
        %419 = vmatprep.subr.bf16.mxu0 0
        %420 = vmatpush1.bf16.msra.mxu0 0
        %421 = vmatprep.subr.bf16.mxu0 0
        %422 = vmatpush1.bf16.msra.mxu0 0
        %423 = vmatprep.subr.bf16.mxu0 0
        %424 = vmatpush1.bf16.msra.mxu0 0
        %425 = vmatprep.mubr.bf16.mxu0 0
        %426 = vmatmul.mubr.bf16.gmra.mrb[0].mxu0 %v391
        %v427 = vpop.f32.mrb[0].mxu0
        %v428 = vadd.f32 0.0, %v427
        %v429 = vpop.f32.mrb[0].mxu0
        %v430 = vadd.f32 0.0, %v429
        %v431 = vpop.f32.mrb[0].mxu0
        %v432 = vpop.f32.mrb[0].mxu0
        %433 = vdwg.mxu0
        %434 = vmatprep.subr.bf16.mxu0 %v344
        %435 = vmatpush1.bf16.msra.mxu0 %v343
        %436 = vmatprep.subr.bf16.mxu0 %v350
        %437 = vmatpush1.bf16.msra.mxu0 %v349
        %438 = vmatprep.subr.bf16.mxu0 %v356
        %439 = vmatpush1.bf16.msra.mxu0 %v355
        %440 = vmatprep.subr.bf16.mxu0 %v362
        %441 = vmatpush1.bf16.msra.mxu0 %v361
        %442 = vmatprep.subr.bf16.mxu0 0
        %443 = vmatpush1.bf16.msra.mxu0 0
        %444 = vmatprep.subr.bf16.mxu0 0
        %445 = vmatpush1.bf16.msra.mxu0 0
        %446 = vmatprep.subr.bf16.mxu0 0
        %447 = vmatpush1.bf16.msra.mxu0 0
        %448 = vmatprep.subr.bf16.mxu0 0
        %449 = vmatpush1.bf16.msra.mxu0 0
        %450 = vmatprep.subr.bf16.mxu0 0
        %451 = vmatpush1.bf16.msra.mxu0 0
        %452 = vmatprep.subr.bf16.mxu0 0
        %453 = vmatpush1.bf16.msra.mxu0 0
        %454 = vmatprep.subr.bf16.mxu0 0
        %455 = vmatpush1.bf16.msra.mxu0 0
        %456 = vmatprep.subr.bf16.mxu0 0
        %457 = vmatpush1.bf16.msra.mxu0 0
        %458 = vmatprep.subr.bf16.mxu0 0
        %459 = vmatpush1.bf16.msra.mxu0 0
        %460 = vmatprep.subr.bf16.mxu0 0
        %461 = vmatpush1.bf16.msra.mxu0 0
        %462 = vmatprep.subr.bf16.mxu0 0
        %463 = vmatpush1.bf16.msra.mxu0 0
        %464 = vmatprep.subr.bf16.mxu0 0
        %465 = vmatpush1.bf16.msra.mxu0 0
        %466 = vmatprep.mubr.bf16.mxu0 0
        %467 = vmatmul.mubr.bf16.gmra.mrb[0].mxu0 %v391
        %v468 = vpop.f32.mrb[0].mxu0
        %v469 = vadd.f32 0.0, %v468
        %v470 = vpop.f32.mrb[0].mxu0
        %v471 = vadd.f32 0.0, %v470
        %v472 = vpop.f32.mrb[0].mxu0
        %v473 = vpop.f32.mrb[0].mxu0
        %474 = vdwg.mxu0
        %475 = vmatprep.subr.bf16.mxu0 %v346
        %476 = vmatpush1.bf16.msra.mxu0 %v345
        %477 = vmatprep.subr.bf16.mxu0 %v352
        %478 = vmatpush1.bf16.msra.mxu0 %v351
        %479 = vmatprep.subr.bf16.mxu0 %v358
        %480 = vmatpush1.bf16.msra.mxu0 %v357
        %481 = vmatprep.subr.bf16.mxu0 %v364
        %482 = vmatpush1.bf16.msra.mxu0 %v363
        %483 = vmatprep.subr.bf16.mxu0 0
        %484 = vmatpush1.bf16.msra.mxu0 0
        %485 = vmatprep.subr.bf16.mxu0 0
        %486 = vmatpush1.bf16.msra.mxu0 0
        %487 = vmatprep.subr.bf16.mxu0 0
        %488 = vmatpush1.bf16.msra.mxu0 0
        %489 = vmatprep.subr.bf16.mxu0 0
        %490 = vmatpush1.bf16.msra.mxu0 0
        %491 = vmatprep.subr.bf16.mxu0 0
        %492 = vmatpush1.bf16.msra.mxu0 0
        %493 = vmatprep.subr.bf16.mxu0 0
        %494 = vmatpush1.bf16.msra.mxu0 0
        %495 = vmatprep.subr.bf16.mxu0 0
        %496 = vmatpush1.bf16.msra.mxu0 0
        %497 = vmatprep.subr.bf16.mxu0 0
        %498 = vmatpush1.bf16.msra.mxu0 0
        %499 = vmatprep.subr.bf16.mxu0 0
        %500 = vmatpush1.bf16.msra.mxu0 0
        %501 = vmatprep.subr.bf16.mxu0 0
        %502 = vmatpush1.bf16.msra.mxu0 0
        %503 = vmatprep.subr.bf16.mxu0 0
        %504 = vmatpush1.bf16.msra.mxu0 0
        %505 = vmatprep.subr.bf16.mxu0 0
        %506 = vmatpush1.bf16.msra.mxu0 0
        %507 = vmatprep.mubr.bf16.mxu0 0
        %508 = vmatmul.mubr.bf16.gmra.mrb[0].mxu0 %v391
        %v509 = vpop.f32.mrb[0].mxu0
        %v510 = vadd.f32 0.0, %v509
        %v511 = vpop.f32.mrb[0].mxu0
        %v512 = vadd.f32 0.0, %v511
        %v513 = vpop.f32.mrb[0].mxu0
        %v514 = vpop.f32.mrb[0].mxu0
        %515 = vdwg.mxu0
        %v516 = vpack.c.bf16 %v428, %v428
        %v517 = vpack.c.bf16 %v430, %v430
        %v518 = vpack.c.bf16 %v469, %v469
        %v519 = vpack.c.bf16 %v471, %v471
        %v520 = vpack.c.bf16 %v510, %v510
        %v521 = vpack.c.bf16 %v512, %v512
        %v522 = vld [vmem:[#allocation7] sm:$0xf]
        %v523 = vld [vmem:[#allocation7 + $0x4] sm:$0xf]
        %v524 = vld [vmem:[#allocation7 + $0x8] sm:$0xf]
        %v525 = vld [vmem:[#allocation7 + $0xc] sm:$0xf]
        %v526 = vld [vmem:[#allocation7 + $0x10] sm:$0xf]
        %v527 = vld [vmem:[#allocation7 + $0x14] sm:$0xf]
        %v528 = vld [vmem:[#allocation7 + $0x18] sm:$0xf]
        %v529 = vld [vmem:[#allocation7 + $0x1c] sm:$0xf]
        %v530 = vld [vmem:[#allocation7 + $0x20] sm:$0xf]
        %v531 = vld [vmem:[#allocation7 + $0x24] sm:$0xf]
        %v532 = vld [vmem:[#allocation7 + $0x28] sm:$0xf]
        %v533 = vld [vmem:[#allocation7 + $0x2c] sm:$0xf]
        %v534 = vld [vmem:[#allocation7 + $0x30] sm:$0xf]
        %v535 = vld [vmem:[#allocation7 + $0x34] sm:$0xf]
        %v536 = vld [vmem:[#allocation7 + $0x38] sm:$0xf]
        %v537 = vld [vmem:[#allocation7 + $0x3c] sm:$0xf]
        %v538 = vld [vmem:[#allocation7 + $0x40] sm:$0xf]
        %v539 = vld [vmem:[#allocation7 + $0x44] sm:$0xf]
        %v540 = vld [vmem:[#allocation7 + $0x48] sm:$0xf]
        %v541 = vld [vmem:[#allocation7 + $0x4c] sm:$0xf]
        %v542 = vld [vmem:[#allocation7 + $0x50] sm:$0xf]
        %v543 = vld [vmem:[#allocation7 + $0x54] sm:$0xf]
        %v544 = vld [vmem:[#allocation7 + $0x58] sm:$0xf]
        %v545 = vld [vmem:[#allocation7 + $0x5c] sm:$0xf]
        %v546 = vld [vmem:[#allocation7 + $0x60] sm:$0xf]
        %v547 = vld [vmem:[#allocation7 + $0x64] sm:$0xf]
        %v548 = vld [vmem:[#allocation7 + $0x68] sm:$0xf]
        %v549 = vld [vmem:[#allocation7 + $0x6c] sm:$0xf]
        %v550 = vld [vmem:[#allocation7 + $0x70] sm:$0xf]
        %v551 = vld [vmem:[#allocation7 + $0x74] sm:$0xf]
        %v552 = vld [vmem:[#allocation7 + $0x78] sm:$0xf]
        %v553 = vld [vmem:[#allocation7 + $0x7c] sm:$0xf]
        %v554 = vld [vmem:[#allocation7 + $0x80] sm:$0xf]
        %v555 = vld [vmem:[#allocation7 + $0x84] sm:$0xf]
        %v556 = vld [vmem:[#allocation7 + $0x88] sm:$0xf]
        %v557 = vld [vmem:[#allocation7 + $0x8c] sm:$0xf]
        %v558 = vld [vmem:[#allocation7 + $0x90] sm:$0xf]
        %v559 = vld [vmem:[#allocation7 + $0x94] sm:$0xf]
        %v560 = vld [vmem:[#allocation7 + $0x98] sm:$0xf]
        %v561 = vld [vmem:[#allocation7 + $0x9c] sm:$0xf]
        %v562 = vld [vmem:[#allocation7 + $0xa0] sm:$0xf]
        %v563 = vld [vmem:[#allocation7 + $0xa4] sm:$0xf]
        %v564 = vld [vmem:[#allocation7 + $0xa8] sm:$0xf]
        %v565 = vld [vmem:[#allocation7 + $0xac] sm:$0xf]
        %v566 = vld [vmem:[#allocation7 + $0xb0] sm:$0xf]
        %v567 = vld [vmem:[#allocation7 + $0xb4] sm:$0xf]
        %v568 = vld [vmem:[#allocation7 + $0xb8] sm:$0xf]
        %v569 = vld [vmem:[#allocation7 + $0xbc] sm:$0xf]
        %v570 = vld [vmem:[#allocation7 + $0xc0] sm:$0xf]
        %v571 = vld [vmem:[#allocation7 + $0xc4] sm:$0xf]
        %v572 = vld [vmem:[#allocation7 + $0xc8] sm:$0xf]
        %v573 = vld [vmem:[#allocation7 + $0xcc] sm:$0xf]
        %v574 = vld [vmem:[#allocation7 + $0xd0] sm:$0xf]
        %v575 = vld [vmem:[#allocation7 + $0xd4] sm:$0xf]
        %v576 = vld [vmem:[#allocation7 + $0xd8] sm:$0xf]
        %v577 = vld [vmem:[#allocation7 + $0xdc] sm:$0xf]
        %v578 = vld [vmem:[#allocation7 + $0xe0] sm:$0xf]
        %v579 = vld [vmem:[#allocation7 + $0xe4] sm:$0xf]
        %v580 = vld [vmem:[#allocation7 + $0xe8] sm:$0xf]
        %v581 = vld [vmem:[#allocation7 + $0xec] sm:$0xf]
        %v582 = vld [vmem:[#allocation7 + $0xf0] sm:$0xf]
        %v583 = vld [vmem:[#allocation7 + $0xf4] sm:$0xf]
        %v584 = vld [vmem:[#allocation7 + $0xf8] sm:$0xf]
        %v585 = vld [vmem:[#allocation7 + $0xfc] sm:$0xf]
        %v586 = vld [vmem:[#allocation7 + $0x100] sm:$0xf]
        %v587 = vld [vmem:[#allocation7 + $0x104] sm:$0xf]
        %v588 = vld [vmem:[#allocation7 + $0x108] sm:$0xf]
        %v589 = vld [vmem:[#allocation7 + $0x10c] sm:$0xf]
        %v590 = vld [vmem:[#allocation7 + $0x110] sm:$0xf]
        %v591 = vld [vmem:[#allocation7 + $0x114] sm:$0xf]
        %v592 = vld [vmem:[#allocation7 + $0x118] sm:$0xf]
        %v593 = vld [vmem:[#allocation7 + $0x11c] sm:$0xf]
        %v594 = vld [vmem:[#allocation7 + $0x120] sm:$0xf]
        %v595 = vld [vmem:[#allocation7 + $0x124] sm:$0xf]
        %v596 = vld [vmem:[#allocation7 + $0x128] sm:$0xf]
        %v597 = vld [vmem:[#allocation7 + $0x12c] sm:$0xf]
        %v598 = vld [vmem:[#allocation7 + $0x130] sm:$0xf]
        %v599 = vld [vmem:[#allocation7 + $0x134] sm:$0xf]
        %v600 = vld [vmem:[#allocation7 + $0x138] sm:$0xf]
        %v601 = vld [vmem:[#allocation7 + $0x13c] sm:$0xf]
        %v602 = vld [vmem:[#allocation7 + $0x140] sm:$0xf]
        %v603 = vld [vmem:[#allocation7 + $0x144] sm:$0xf]
        %v604 = vld [vmem:[#allocation7 + $0x148] sm:$0xf]
        %v605 = vld [vmem:[#allocation7 + $0x14c] sm:$0xf]
        %v606 = vld [vmem:[#allocation7 + $0x150] sm:$0xf]
        %v607 = vld [vmem:[#allocation7 + $0x154] sm:$0xf]
        %v608 = vld [vmem:[#allocation7 + $0x158] sm:$0xf]
        %v609 = vld [vmem:[#allocation7 + $0x15c] sm:$0xf]
        %v610 = vld [vmem:[#allocation7 + $0x160] sm:$0xf]
        %v611 = vld [vmem:[#allocation7 + $0x164] sm:$0xf]
        %v612 = vld [vmem:[#allocation7 + $0x168] sm:$0xf]
        %v613 = vld [vmem:[#allocation7 + $0x16c] sm:$0xf]
        %v614 = vld [vmem:[#allocation7 + $0x170] sm:$0xf]
        %v615 = vld [vmem:[#allocation7 + $0x174] sm:$0xf]
        %v616 = vld [vmem:[#allocation7 + $0x178] sm:$0xf]
        %v617 = vld [vmem:[#allocation7 + $0x17c] sm:$0xf]
        %v618 = vld [vmem:[%s3] sm:$0x1]
        %v620 = vlaneseq
        %v621 = vshrl.u32 %v620, 7
        %v622 = vsub.s32 0, %v621
        %v623 = vrot.slane %v618, %v622
        %v721 = vunpack.c.l.b16 %v522
        %v722 = vunpack.c.l.b16 %v523
        %v723 = vunpack.c.l.b16 %v524
        %v724 = vunpack.c.l.b16 %v525
        %v725 = vunpack.c.l.b16 %v526
        %v726 = vunpack.c.l.b16 %v527
        %v727 = vunpack.c.l.b16 %v528
        %v728 = vunpack.c.l.b16 %v529
        %v729 = vunpack.c.l.b16 %v530
        %v730 = vunpack.c.l.b16 %v531
        %v731 = vunpack.c.l.b16 %v532
        %v732 = vunpack.c.l.b16 %v533
        %v733 = vunpack.c.l.b16 %v534
        %v734 = vunpack.c.l.b16 %v535
        %v735 = vunpack.c.l.b16 %v536
        %v736 = vunpack.c.l.b16 %v537
        %v737 = vunpack.c.l.b16 %v538
        %v738 = vunpack.c.l.b16 %v539
        %v739 = vunpack.c.l.b16 %v540
        %v740 = vunpack.c.l.b16 %v541
        %v741 = vunpack.c.l.b16 %v542
        %v742 = vunpack.c.l.b16 %v543
        %v743 = vunpack.c.l.b16 %v544
        %v744 = vunpack.c.l.b16 %v545
        %v745 = vunpack.c.l.b16 %v546
        %v746 = vunpack.c.l.b16 %v547
        %v747 = vunpack.c.l.b16 %v548
        %v748 = vunpack.c.l.b16 %v549
        %v749 = vunpack.c.l.b16 %v550
        %v750 = vunpack.c.l.b16 %v551
        %v751 = vunpack.c.l.b16 %v552
        %v752 = vunpack.c.l.b16 %v553
        %v753 = vunpack.c.l.b16 %v554
        %v754 = vunpack.c.l.b16 %v555
        %v755 = vunpack.c.l.b16 %v556
        %v756 = vunpack.c.l.b16 %v557
        %v757 = vunpack.c.l.b16 %v558
        %v758 = vunpack.c.l.b16 %v559
        %v759 = vunpack.c.l.b16 %v560
        %v760 = vunpack.c.l.b16 %v561
        %v761 = vunpack.c.l.b16 %v562
        %v762 = vunpack.c.l.b16 %v563
        %v763 = vunpack.c.l.b16 %v564
        %v764 = vunpack.c.l.b16 %v565
        %v765 = vunpack.c.l.b16 %v566
        %v766 = vunpack.c.l.b16 %v567
        %v767 = vunpack.c.l.b16 %v568
        %v768 = vunpack.c.l.b16 %v569
        %v769 = vunpack.c.l.b16 %v570
        %v770 = vunpack.c.l.b16 %v571
        %v771 = vunpack.c.l.b16 %v572
        %v772 = vunpack.c.l.b16 %v573
        %v773 = vunpack.c.l.b16 %v574
        %v774 = vunpack.c.l.b16 %v575
        %v775 = vunpack.c.l.b16 %v576
        %v776 = vunpack.c.l.b16 %v577
        %v777 = vunpack.c.l.b16 %v578
        %v778 = vunpack.c.l.b16 %v579
        %v779 = vunpack.c.l.b16 %v580
        %v780 = vunpack.c.l.b16 %v581
        %v781 = vunpack.c.l.b16 %v582
        %v782 = vunpack.c.l.b16 %v583
        %v783 = vunpack.c.l.b16 %v584
        %v784 = vunpack.c.l.b16 %v585
        %v785 = vunpack.c.l.b16 %v586
        %v786 = vunpack.c.l.b16 %v587
        %v787 = vunpack.c.l.b16 %v588
        %v788 = vunpack.c.l.b16 %v589
        %v789 = vunpack.c.l.b16 %v590
        %v790 = vunpack.c.l.b16 %v591
        %v791 = vunpack.c.l.b16 %v592
        %v792 = vunpack.c.l.b16 %v593
        %v793 = vunpack.c.l.b16 %v594
        %v794 = vunpack.c.l.b16 %v595
        %v795 = vunpack.c.l.b16 %v596
        %v796 = vunpack.c.l.b16 %v597
        %v797 = vunpack.c.l.b16 %v598
        %v798 = vunpack.c.l.b16 %v599
        %v799 = vunpack.c.l.b16 %v600
        %v800 = vunpack.c.l.b16 %v601
        %v801 = vunpack.c.l.b16 %v602
        %v802 = vunpack.c.l.b16 %v603
        %v803 = vunpack.c.l.b16 %v604
        %v804 = vunpack.c.l.b16 %v605
        %v805 = vunpack.c.l.b16 %v606
        %v806 = vunpack.c.l.b16 %v607
        %v807 = vunpack.c.l.b16 %v608
        %v808 = vunpack.c.l.b16 %v609
        %v809 = vunpack.c.l.b16 %v610
        %v810 = vunpack.c.l.b16 %v611
        %v811 = vunpack.c.l.b16 %v612
        %v812 = vunpack.c.l.b16 %v613
        %v813 = vunpack.c.l.b16 %v614
        %v814 = vunpack.c.l.b16 %v615
        %v815 = vunpack.c.l.b16 %v616
        %v816 = vunpack.c.l.b16 %v617
        %v817 = vpack.c.b16 %v722, %v721
        %v818 = vpack.c.b16 %v724, %v723
        %v819 = vpack.c.b16 %v726, %v725
        %v820 = vpack.c.b16 %v728, %v727
        %v821 = vpack.c.b16 %v730, %v729
        %v822 = vpack.c.b16 %v732, %v731
        %v823 = vpack.c.b16 %v734, %v733
        %v824 = vpack.c.b16 %v736, %v735
        %v825 = vpack.c.b16 %v738, %v737
        %v826 = vpack.c.b16 %v740, %v739
        %v827 = vpack.c.b16 %v742, %v741
        %v828 = vpack.c.b16 %v744, %v743
        %v829 = vpack.c.b16 %v746, %v745
        %v830 = vpack.c.b16 %v748, %v747
        %v831 = vpack.c.b16 %v750, %v749
        %v832 = vpack.c.b16 %v752, %v751
        %v833 = vpack.c.b16 %v754, %v753
        %v834 = vpack.c.b16 %v756, %v755
        %v835 = vpack.c.b16 %v758, %v757
        %v836 = vpack.c.b16 %v760, %v759
        %v837 = vpack.c.b16 %v762, %v761
        %v838 = vpack.c.b16 %v764, %v763
        %v839 = vpack.c.b16 %v766, %v765
        %v840 = vpack.c.b16 %v768, %v767
        %v841 = vpack.c.b16 %v770, %v769
        %v842 = vpack.c.b16 %v772, %v771
        %v843 = vpack.c.b16 %v774, %v773
        %v844 = vpack.c.b16 %v776, %v775
        %v845 = vpack.c.b16 %v778, %v777
        %v846 = vpack.c.b16 %v780, %v779
        %v847 = vpack.c.b16 %v782, %v781
        %v848 = vpack.c.b16 %v784, %v783
        %v849 = vpack.c.b16 %v786, %v785
        %v850 = vpack.c.b16 %v788, %v787
        %v851 = vpack.c.b16 %v790, %v789
        %v852 = vpack.c.b16 %v792, %v791
        %v853 = vpack.c.b16 %v794, %v793
        %v854 = vpack.c.b16 %v796, %v795
        %v855 = vpack.c.b16 %v798, %v797
        %v856 = vpack.c.b16 %v800, %v799
        %v857 = vpack.c.b16 %v802, %v801
        %v858 = vpack.c.b16 %v804, %v803
        %v859 = vpack.c.b16 %v806, %v805
        %v860 = vpack.c.b16 %v808, %v807
        %v861 = vpack.c.b16 %v810, %v809
        %v862 = vpack.c.b16 %v812, %v811
        %v863 = vpack.c.b16 %v814, %v813
        %v864 = vpack.c.b16 %v816, %v815
        %913 = vmatprep.subr.bf16.mxu0 0
        %914 = vmatpush1.bf16.msra.mxu0 %v817
        %915 = vmatprep.subr.bf16.mxu0 0
        %916 = vmatpush1.bf16.msra.mxu0 %v818
        %917 = vmatprep.subr.bf16.mxu0 0
        %918 = vmatpush1.bf16.msra.mxu0 %v819
        %919 = vmatprep.subr.bf16.mxu0 0
        %920 = vmatpush1.bf16.msra.mxu0 %v820
        %921 = vmatprep.subr.bf16.mxu0 0
        %922 = vmatpush1.bf16.msra.mxu0 %v821
        %923 = vmatprep.subr.bf16.mxu0 0
        %924 = vmatpush1.bf16.msra.mxu0 %v822
        %925 = vmatprep.subr.bf16.mxu0 0
        %926 = vmatpush1.bf16.msra.mxu0 %v823
        %927 = vmatprep.subr.bf16.mxu0 0
        %928 = vmatpush1.bf16.msra.mxu0 %v824
        %929 = vmatprep.subr.bf16.mxu0 0
        %930 = vmatpush1.bf16.msra.mxu0 %v825
        %931 = vmatprep.subr.bf16.mxu0 0
        %932 = vmatpush1.bf16.msra.mxu0 %v826
        %933 = vmatprep.subr.bf16.mxu0 0
        %934 = vmatpush1.bf16.msra.mxu0 %v827
        %935 = vmatprep.subr.bf16.mxu0 0
        %936 = vmatpush1.bf16.msra.mxu0 %v828
        %937 = vmatprep.subr.bf16.mxu0 0
        %938 = vmatpush1.bf16.msra.mxu0 %v829
        %939 = vmatprep.subr.bf16.mxu0 0
        %940 = vmatpush1.bf16.msra.mxu0 %v830
        %941 = vmatprep.subr.bf16.mxu0 0
        %942 = vmatpush1.bf16.msra.mxu0 %v831
        %943 = vmatprep.subr.bf16.mxu0 0
        %944 = vmatpush1.bf16.msra.mxu0 %v832
        %945 = vmatprep.mubr.bf16.mxu0 %v517
        %946 = vmatmul.mubr.bf16.gmra.mrb[0].mxu0 %v516
        %v947 = vpop.f32.mrb[0].mxu0
        %v948 = vadd.f32 %v623, %v947
        %v949 = vpop.f32.mrb[0].mxu0
        %v950 = vpop.f32.mrb[0].mxu0
        %v951 = vpop.f32.mrb[0].mxu0
        %952 = vdwg.mxu0
        %953 = vmatprep.subr.bf16.mxu0 0
        %954 = vmatpush1.bf16.msra.mxu0 %v833
        %955 = vmatprep.subr.bf16.mxu0 0
        %956 = vmatpush1.bf16.msra.mxu0 %v834
        %957 = vmatprep.subr.bf16.mxu0 0
        %958 = vmatpush1.bf16.msra.mxu0 %v835
        %959 = vmatprep.subr.bf16.mxu0 0
        %960 = vmatpush1.bf16.msra.mxu0 %v836
        %961 = vmatprep.subr.bf16.mxu0 0
        %962 = vmatpush1.bf16.msra.mxu0 %v837
        %963 = vmatprep.subr.bf16.mxu0 0
        %964 = vmatpush1.bf16.msra.mxu0 %v838
        %965 = vmatprep.subr.bf16.mxu0 0
        %966 = vmatpush1.bf16.msra.mxu0 %v839
        %967 = vmatprep.subr.bf16.mxu0 0
        %968 = vmatpush1.bf16.msra.mxu0 %v840
        %969 = vmatprep.subr.bf16.mxu0 0
        %970 = vmatpush1.bf16.msra.mxu0 %v841
        %971 = vmatprep.subr.bf16.mxu0 0
        %972 = vmatpush1.bf16.msra.mxu0 %v842
        %973 = vmatprep.subr.bf16.mxu0 0
        %974 = vmatpush1.bf16.msra.mxu0 %v843
        %975 = vmatprep.subr.bf16.mxu0 0
        %976 = vmatpush1.bf16.msra.mxu0 %v844
        %977 = vmatprep.subr.bf16.mxu0 0
        %978 = vmatpush1.bf16.msra.mxu0 %v845
        %979 = vmatprep.subr.bf16.mxu0 0
        %980 = vmatpush1.bf16.msra.mxu0 %v846
        %981 = vmatprep.subr.bf16.mxu0 0
        %982 = vmatpush1.bf16.msra.mxu0 %v847
        %983 = vmatprep.subr.bf16.mxu0 0
        %984 = vmatpush1.bf16.msra.mxu0 %v848
        %985 = vmatprep.mubr.bf16.mxu0 %v519
        %986 = vmatmul.mubr.bf16.gmra.mrb[0].mxu0 %v518
        %v987 = vpop.f32.mrb[0].mxu0
        %v988 = vadd.f32 %v948, %v987
        %v989 = vpop.f32.mrb[0].mxu0
        %v990 = vpop.f32.mrb[0].mxu0
        %v991 = vpop.f32.mrb[0].mxu0
        %992 = vdwg.mxu0
        %993 = vmatprep.subr.bf16.mxu0 0
        %994 = vmatpush1.bf16.msra.mxu0 %v849
        %995 = vmatprep.subr.bf16.mxu0 0
        %996 = vmatpush1.bf16.msra.mxu0 %v850
        %997 = vmatprep.subr.bf16.mxu0 0
        %998 = vmatpush1.bf16.msra.mxu0 %v851
        %999 = vmatprep.subr.bf16.mxu0 0
        %1000 = vmatpush1.bf16.msra.mxu0 %v852
        %1001 = vmatprep.subr.bf16.mxu0 0
        %1002 = vmatpush1.bf16.msra.mxu0 %v853
        %1003 = vmatprep.subr.bf16.mxu0 0
        %1004 = vmatpush1.bf16.msra.mxu0 %v854
        %1005 = vmatprep.subr.bf16.mxu0 0
        %1006 = vmatpush1.bf16.msra.mxu0 %v855
        %1007 = vmatprep.subr.bf16.mxu0 0
        %1008 = vmatpush1.bf16.msra.mxu0 %v856
        %1009 = vmatprep.subr.bf16.mxu0 0
        %1010 = vmatpush1.bf16.msra.mxu0 %v857
        %1011 = vmatprep.subr.bf16.mxu0 0
        %1012 = vmatpush1.bf16.msra.mxu0 %v858
        %1013 = vmatprep.subr.bf16.mxu0 0
        %1014 = vmatpush1.bf16.msra.mxu0 %v859
        %1015 = vmatprep.subr.bf16.mxu0 0
        %1016 = vmatpush1.bf16.msra.mxu0 %v860
        %1017 = vmatprep.subr.bf16.mxu0 0
        %1018 = vmatpush1.bf16.msra.mxu0 %v861
        %1019 = vmatprep.subr.bf16.mxu0 0
        %1020 = vmatpush1.bf16.msra.mxu0 %v862
        %1021 = vmatprep.subr.bf16.mxu0 0
        %1022 = vmatpush1.bf16.msra.mxu0 %v863
        %1023 = vmatprep.subr.bf16.mxu0 0
        %1024 = vmatpush1.bf16.msra.mxu0 %v864
        %1025 = vmatprep.mubr.bf16.mxu0 %v521
        %1026 = vmatmul.mubr.bf16.gmra.mrb[0].mxu0 %v520
        %v1027 = vpop.f32.mrb[0].mxu0
        %v1028 = vadd.f32 %v988, %v1027
        %v1029 = vpop.f32.mrb[0].mxu0
        %v1030 = vpop.f32.mrb[0].mxu0
        %v1031 = vpop.f32.mrb[0].mxu0
        %1032 = vdwg.mxu0
        %1033 = vst [vmem:[%s241] sm:$0xff] %v1028
        %s1034 = sand.u32 %s119, 1
        %s1035 = scalar_lea.sflag [#allocation4], %s1034
        %s1036 = sand.u32 %s119, 1
        %s1037 = smul.addr %s1036, 8
        %s1038 = scalar_lea.vmem [#allocation8], %s1037
        // Predicated region
        $region49: #{tpu_custom_call.1} parent=35 // pred_check
          %p1039 = pneg %p129
        $region50: #{tpu_custom_call.1} parent=35 // pred_check_branch
          %1041 = sbr.rel (%p1039) target = $region52
        $region51: #{tpu_custom_call.1} parent=35 // pred_region
          %s1043 = ssub.s32 128, 128
          %1044 = vsyncadd %s1035, %s1043
          %s1045 = smul.addr %s22, 128
          %s1046 = scalar_lea.hbm %s4, %s1045
          %s1048 = sshll.u32 %s1038, 4
          %s1049 = int_to_ptr.vmem [resolvable:$true] %s1048
          %1051 = dma.vmem_to_hbm [thread:$0]  %s1049, 128, %s1046, %s1035
        $region52: #{tpu_custom_call.1} parent=35 // pred_fallthru
          _
      $region36: #{tpu_custom_call.1} parent=5 // pred_fallthru
        _
      %p1052 = scmp.le.s32.totalorder 2, %s17
      // Predicated region
      $region53: #{tpu_custom_call.1} parent=5 // pred_check
        %p1053 = pneg %p1052
      $region54: #{tpu_custom_call.1} parent=5 // pred_check_branch
        %1055 = sbr.rel (%p1053) target = $region56
      $region55: #{tpu_custom_call.1} parent=5 // pred_region
        %s1056 = ssub.s32 %s17, 2
        // Predicated region
        $region57: #{tpu_custom_call.1} parent=55 // pred_check
          %p1057 = pneg %p135
        $region58: #{tpu_custom_call.1} parent=55 // pred_check_branch
          %1059 = sbr.rel (%p1057) target = $region60
        $region59: #{tpu_custom_call.1} parent=55 // pred_region
          %s1060 = sand.u32 %s120, 1
          %s1061 = scalar_lea.sflag [#allocation4], %s1060
          %s1062 = sand.u32 %s120, 1
          %s1063 = smul.addr %s1062, 8
          %s1064 = scalar_lea.vmem [#allocation8], %s1063
          %1065 = dma.done %s1061, 128
        $region60: #{tpu_custom_call.1} parent=55 // pred_fallthru
          _
      $region56: #{tpu_custom_call.1} parent=5 // pred_fallthru
        _
    $region6: #{tpu_custom_call.1} parent=1 // loop_footer
      %s21 = sadd.s32 1, %s17
    $region7: #{tpu_custom_call.1} parent=1 // loop_footer_branch
      %16 = sbr.rel target = $region3
    $region8: #{tpu_custom_call.1} parent=1 // loop_exit
      _
    %1066 = vsyncpa [#allocation3], 1
    %s1067 = scalar_lea.sflag [#allocation3], 1
    %1068 = vsyncpa %s1067, 1
    %1069 = vsyncpa [#allocation6], 1
    %1070 = vsyncpa [#allocation4], 1
    %s1071 = scalar_lea.sflag [#allocation4], 1
    %1072 = vsyncpa %s1071, 1

// kernel: tpu_custom_call.1
$region0: #{tpu_custom_call.1}
  #allocation0 [shape = 'u32[]', space=smem, size = 0x4, offset = 0x4, fixed_abs, tag = 'smem constant byte address 0x4 - core index']
  #allocation1 [shape = 'u32[144,128]{1,0:T(1,128)}', space=vmem, size = 0x12000, scoped, tag = 'internal scratch']
  %s0 = inlined_call_operand.hbm [shape: f32[16,64], index: 0, kind: input, shape index: {}]
  %s1 = inlined_call_operand.hbm [shape: bf16[64,768], index: 1, kind: input, shape index: {}]
  %s2 = inlined_call_operand.hbm [shape: bf16[768,128], index: 2, kind: input, shape index: {}]
  %s3 = inlined_call_operand.vmem [shape: f32[1,128], index: 3, kind: input, shape index: {}]
  %s4 = inlined_call_operand.hbm [shape: f32[16,128], index: 4, kind: output, shape index: {}]
  %s5 = sld [smem:[#allocation0]]
  $region61: #{tpu_custom_call.1} parent=0
    _
  %s7 = ssub.s32 1, %s5
  %s8 = scalar_select 0, %s7, %s5
  $region1: #{tpu_custom_call.1} parent=0
    #allocation2 [shape = 'u8[8192]{0}', space=vmem, size = 0x2000, scoped, tag = 'input window, operand 0']
    #allocation3 [shape = 's32[2]{0}', space=sflag, size = 0x8, scoped, tag = 'scoped memory for tpu_custom_call.1']
    #allocation4 [shape = 's32[2]{0}', space=sflag, size = 0x8, scoped, tag = 'scoped memory for tpu_custom_call.1']
    #allocation5 [shape = 'u8[98304]{0}', space=vmem, size = 0x18000, scoped, tag = 'input window, operand 1, single buffered']
    #allocation6 [shape = 's32[1]{0}', space=sflag, size = 0x4, scoped, tag = 'scoped memory for tpu_custom_call.1']
    #allocation7 [shape = 'u8[196608]{0}', space=vmem, size = 0x30000, scoped, tag = 'input window, operand 2, single buffered']
    #allocation8 [shape = 'u8[8192]{0}', space=vmem, size = 0x2000, scoped, tag = 'output window, operand 0']
    %9 = vsyncpa [#allocation3], 0
    %s10 = scalar_lea.sflag [#allocation3], 1
    %11 = vsyncpa %s10, 0
    %12 = vsyncpa [#allocation6], 0
    %13 = vsyncpa [#allocation4], 0
    %s14 = scalar_lea.sflag [#allocation4], 1
    %15 = vsyncpa %s14, 0
    loop: start=0, step=1, limit=4
    $region2: #{tpu_custom_call.1} parent=1 // loop_pre_header
      _
    $region3: #{tpu_custom_call.1} parent=1 // loop_header
      %s17 = sphi 0, %s21
      %p18 = scmp.ge.s32.totalorder %s17, 4
      %s27 = sphi 0, %s29
      %s30 = sphi 0, %s27
      %s31 = sphi 0, %s30
      %s47 = sphi 0, %s31
      %s51 = sphi 0, %s51
      %s53 = sphi 0, %s51
      %s54 = sphi 0, %s53
      %s68 = sphi 0, %s54
      %s72 = sphi 0, %s72
      %s74 = sphi 0, %s72
      %s75 = sphi 0, %s74
      %s89 = sphi 0, %s75
      %s93 = sphi 0, %s93
      %s95 = sphi 0, %s93
      %s96 = sphi 0, %s95
      %s110 = sphi 0, %s96
      %s116 = sphi 0, %s118
      %s119 = sphi 0, %s116
      %s120 = sphi 0, %s119
      %s136 = sphi 0, %s120
    $region4: #{tpu_custom_call.1} parent=1 // loop_header_branch
      %20 = sbr.rel (%p18) target = $region8
    $region5: #{tpu_custom_call.1} parent=1 // loop_body
      %s22 = ssub.s32 %s17, 1
      %s23 = ssub.s32 %s17, 2
      %s24 = sadd.s32 %s17, 1
      %s25 = ssub.s32 %s17, %s24
      %p26 = scmp.eq.s32.totalorder %s25, 0
      %s28 = sadd.s32 %s27, 1
      %s29 = scalar_select %p26, %s27, %s28
      %p32 = pneg %p26
      %p33 = scmp.eq.s32.totalorder %s17, 1
      %p34 = por %p32, %p33
      %p35 = scmp.ne.s32.totalorder %s27, %s30
      %p36 = scmp.eq.s32.totalorder %s17, 0
      %p37 = por %p35, %p36
      %p38 = scmp.ne.s32.totalorder %s27, %s30
      %p39 = scmp.eq.s32.totalorder %s22, 1
      %p40 = por %p38, %p39
      %p41 = scmp.ne.s32.totalorder %s30, %s31
      %p42 = scmp.eq.s32.totalorder %s22, 0
      %p43 = por %p41, %p42
      %p44 = scmp.ne.s32.totalorder %s30, %s31
      %p45 = scmp.eq.s32.totalorder %s23, 1
      %p46 = por %p44, %p45
      %p48 = scmp.ne.s32.totalorder %s31, %s47
      %p49 = scmp.eq.s32.totalorder %s23, 0
      %p50 = por %p48, %p49
      %s52 = sadd.s32 %s51, 1
      %p55 = scmp.eq.s32.totalorder %s17, 1
      %p56 = scmp.ne.s32.totalorder %s51, %s53
      %p57 = scmp.eq.s32.totalorder %s17, 0
      %p58 = por %p56, %p57
      %p59 = scmp.ne.s32.totalorder %s51, %s53
      %p60 = scmp.eq.s32.totalorder %s22, 1
      %p61 = por %p59, %p60
      %p62 = scmp.ne.s32.totalorder %s53, %s54
      %p63 = scmp.eq.s32.totalorder %s22, 0
      %p64 = por %p62, %p63
      %p65 = scmp.ne.s32.totalorder %s53, %s54
      %p66 = scmp.eq.s32.totalorder %s23, 1
      %p67 = por %p65, %p66
      %p69 = scmp.ne.s32.totalorder %s54, %s68
      %p70 = scmp.eq.s32.totalorder %s23, 0
      %p71 = por %p69, %p70
      %s73 = sadd.s32 %s72, 1
      %p76 = scmp.eq.s32.totalorder %s17, 1
      %p77 = scmp.ne.s32.totalorder %s72, %s74
      %p78 = scmp.eq.s32.totalorder %s17, 0
      %p79 = por %p77, %p78
      %p80 = scmp.ne.s32.totalorder %s72, %s74
      %p81 = scmp.eq.s32.totalorder %s22, 1
      %p82 = por %p80, %p81
      %p83 = scmp.ne.s32.totalorder %s74, %s75
      %p84 = scmp.eq.s32.totalorder %s22, 0
      %p85 = por %p83, %p84
      %p86 = scmp.ne.s32.totalorder %s74, %s75
      %p87 = scmp.eq.s32.totalorder %s23, 1
      %p88 = por %p86, %p87
      %p90 = scmp.ne.s32.totalorder %s75, %s89
      %p91 = scmp.eq.s32.totalorder %s23, 0
      %p92 = por %p90, %p91
      %s94 = sadd.s32 %s93, 1
      %p97 = scmp.eq.s32.totalorder %s17, 1
      %p98 = scmp.ne.s32.totalorder %s93, %s95
      %p99 = scmp.eq.s32.totalorder %s17, 0
      %p100 = por %p98, %p99
      %p101 = scmp.ne.s32.totalorder %s93, %s95
      %p102 = scmp.eq.s32.totalorder %s22, 1
      %p103 = por %p101, %p102
      %p104 = scmp.ne.s32.totalorder %s95, %s96
      %p105 = scmp.eq.s32.totalorder %s22, 0
      %p106 = por %p104, %p105
      %p107 = scmp.ne.s32.totalorder %s95, %s96
      %p108 = scmp.eq.s32.totalorder %s23, 1
      %p109 = por %p107, %p108
      %p111 = scmp.ne.s32.totalorder %s96, %s110
      %p112 = scmp.eq.s32.totalorder %s23, 0
      %p113 = por %p111, %p112
      %s114 = ssub.s32 %s17, %s24
      %p115 = scmp.eq.s32.totalorder %s114, 0
      %s117 = sadd.s32 %s116, 1
      %s118 = scalar_select %p115, %s116, %s117
      %p121 = pneg %p115
      %p122 = scmp.eq.s32.totalorder %s17, 1
      %p123 = por %p121, %p122
      %p124 = scmp.ne.s32.totalorder %s116, %s119
      %p125 = scmp.eq.s32.totalorder %s17, 0
      %p126 = por %p124, %p125
      %p127 = scmp.ne.s32.totalorder %s116, %s119
      %p128 = scmp.eq.s32.totalorder %s22, 1
      %p129 = por %p127, %p128
      %p130 = scmp.ne.s32.totalorder %s119, %s120
      %p131 = scmp.eq.s32.totalorder %s22, 0
      %p132 = por %p130, %p131
      %p133 = scmp.ne.s32.totalorder %s119, %s120
      %p134 = scmp.eq.s32.totalorder %s23, 1
      %p135 = por %p133, %p134
      %p137 = scmp.ne.s32.totalorder %s120, %s136
      %p138 = scmp.eq.s32.totalorder %s23, 0
      %p139 = por %p137, %p138
      %p140 = scmp.le.s32.totalorder 1, %s17
      %p141 = scmp.lt.s32.totalorder %s17, 3
      %p142 = pnand %p140, %p141
      %p143 = pneg %p142
      // Predicated region
      $region9: #{tpu_custom_call.1} parent=5 // pred_check
        _
      $region10: #{tpu_custom_call.1} parent=5 // pred_check_branch
        %145 = sbr.rel (%p142) target = $region12
      $region11: #{tpu_custom_call.1} parent=5 // pred_region
        %s146 = ssub.s32 %s17, 1
        // Predicated region
        $region13: #{tpu_custom_call.1} parent=11 // pred_check
          %p147 = pneg %p64
        $region14: #{tpu_custom_call.1} parent=11 // pred_check_branch
          %149 = sbr.rel (%p147) target = $region16
        $region15: #{tpu_custom_call.1} parent=11 // pred_region
          %s151 = ssub.s32 3072, 3072
          %152 = vsyncadd [#allocation6], %s151
          %s153 = sshll.u32 [#allocation5], 4
          %s154 = int_to_ptr.vmem [resolvable:$true] %s153
          %159 = dma.hbm_to_vmem [thread:$0]  %s1, 3072, %s154, [#allocation6], 384, 384, 24
        $region16: #{tpu_custom_call.1} parent=11 // pred_fallthru
          _
        // Predicated region
        $region17: #{tpu_custom_call.1} parent=11 // pred_check
          %p160 = pneg %p85
        $region18: #{tpu_custom_call.1} parent=11 // pred_check_branch
          %162 = sbr.rel (%p160) target = $region20
        $region19: #{tpu_custom_call.1} parent=11 // pred_region
          %s164 = ssub.s32 6144, 6144
          %165 = vsyncadd [#allocation6], %s164
          %s166 = sshll.u32 [#allocation7], 4
          %s167 = int_to_ptr.vmem [resolvable:$true] %s166
          %172 = dma.hbm_to_vmem [thread:$0]  %s2, 6144, %s167, [#allocation6], 64, 64, 4
        $region20: #{tpu_custom_call.1} parent=11 // pred_fallthru
          _
        // Predicated region
        $region21: #{tpu_custom_call.1} parent=11 // pred_check
          %p173 = pneg %p106
        $region22: #{tpu_custom_call.1} parent=11 // pred_check_branch
          %175 = sbr.rel (%p173) target = $region24
        $region23: #{tpu_custom_call.1} parent=11 // pred_region
          _
        $region24: #{tpu_custom_call.1} parent=11 // pred_fallthru
          _
      $region12: #{tpu_custom_call.1} parent=5 // pred_fallthru
        _
      %p176 = scmp.lt.s32.totalorder %s17, 2
      // Predicated region
      $region25: #{tpu_custom_call.1} parent=5 // pred_check
        %p177 = pneg %p176
      $region26: #{tpu_custom_call.1} parent=5 // pred_check_branch
        %179 = sbr.rel (%p177) target = $region28
      $region27: #{tpu_custom_call.1} parent=5 // pred_region
        // Predicated region
        $region29: #{tpu_custom_call.1} parent=27 // pred_check
          %p180 = pneg %p37
        $region30: #{tpu_custom_call.1} parent=27 // pred_check_branch
          %182 = sbr.rel (%p180) target = $region32
        $region31: #{tpu_custom_call.1} parent=27 // pred_region
          %s183 = sand.u32 %s27, 1
          %s184 = scalar_lea.sflag [#allocation3], %s183
          %s185 = sand.u32 %s27, 1
          %s186 = smul.addr %s185, 8
          %s187 = scalar_lea.vmem [#allocation2], %s186
          %s189 = ssub.s32 128, 128
          %190 = vsyncadd %s184, %s189
          %s191 = smul.addr %s17, 128
          %s192 = scalar_lea.hbm %s0, %s191
          %s194 = sshll.u32 %s187, 4
          %s195 = int_to_ptr.vmem [resolvable:$true] %s194
          %197 = dma.hbm_to_vmem [thread:$0]  %s192, 128, %s195, %s184
        $region32: #{tpu_custom_call.1} parent=27 // pred_fallthru
          _
      $region28: #{tpu_custom_call.1} parent=5 // pred_fallthru
        _
      %p198 = scmp.le.s32.totalorder 1, %s17
      %p199 = scmp.lt.s32.totalorder %s17, 3
      %p200 = pnand %p198, %p199
      %p201 = pneg %p200
      // Predicated region
      $region33: #{tpu_custom_call.1} parent=5 // pred_check
        _
      $region34: #{tpu_custom_call.1} parent=5 // pred_check_branch
        %203 = sbr.rel (%p200) target = $region36
      $region35: #{tpu_custom_call.1} parent=5 // pred_region
        %s204 = ssub.s32 %s17, 1
        %s205 = sand.u32 %s30, 1
        %s206 = scalar_lea.sflag [#allocation3], %s205
        %s207 = sand.u32 %s30, 1
        %s208 = smul.addr %s207, 8
        %s209 = scalar_lea.vmem [#allocation2], %s208
        // Predicated region
        $region37: #{tpu_custom_call.1} parent=35 // pred_check
          %p210 = pneg %p43
        $region38: #{tpu_custom_call.1} parent=35 // pred_check_branch
          %212 = sbr.rel (%p210) target = $region40
        $region39: #{tpu_custom_call.1} parent=35 // pred_region
          %213 = dma.done %s206, 128
        $region40: #{tpu_custom_call.1} parent=35 // pred_fallthru
          _
        // Predicated region
        $region41: #{tpu_custom_call.1} parent=35 // pred_check
          %p214 = pneg %p64
        $region42: #{tpu_custom_call.1} parent=35 // pred_check_branch
          %216 = sbr.rel (%p214) target = $region44
        $region43: #{tpu_custom_call.1} parent=35 // pred_region
          %217 = dma.done [#allocation6], 3072
        $region44: #{tpu_custom_call.1} parent=35 // pred_fallthru
          _
        // Predicated region
        $region45: #{tpu_custom_call.1} parent=35 // pred_check
          %p218 = pneg %p85
        $region46: #{tpu_custom_call.1} parent=35 // pred_check_branch
          %220 = sbr.rel (%p218) target = $region48
        $region47: #{tpu_custom_call.1} parent=35 // pred_region
          %221 = dma.done [#allocation6], 6144
        $region48: #{tpu_custom_call.1} parent=35 // pred_fallthru
          _
        %s222 = sand.u32 %s30, 1
        %s223 = scalar_lea.sflag [#allocation3], %s222
        %s224 = sand.u32 %s30, 1
        %s225 = smul.addr %s224, 8
        %s226 = scalar_lea.vmem [#allocation2], %s225
        %p227 = pneg %p43
        %p228 = pneg %p40
        %p229 = pneg %p64
        %p230 = pneg %p61
        %p231 = pneg %p85
        %p232 = pneg %p82
        %p233 = pneg %p106
        %p234 = pneg %p103
        %p235 = pneg %p132
        %p236 = pneg %p129
        %s237 = sand.u32 %s119, 1
        %s238 = scalar_lea.sflag [#allocation4], %s237
        %s239 = sand.u32 %s119, 1
        %s240 = smul.addr %s239, 8
        %s241 = scalar_lea.vmem [#allocation8], %s240
        %v243 = vld [vmem:[%s209] sm:$0xff]
        %v244 = vpack.c.bf16 %v243, %v243
        %v245 = vld [vmem:[#allocation5] sm:$0xff]
        %v246 = vld [vmem:[#allocation5 + $0x8] sm:$0xff]
        %v247 = vld [vmem:[#allocation5 + $0x10] sm:$0xff]
        %v248 = vld [vmem:[#allocation5 + $0x18] sm:$0xff]
        %v249 = vld [vmem:[#allocation5 + $0x20] sm:$0xff]
        %v250 = vld [vmem:[#allocation5 + $0x28] sm:$0xff]
        %v251 = vld [vmem:[#allocation5 + $0x30] sm:$0xff]
        %v252 = vld [vmem:[#allocation5 + $0x38] sm:$0xff]
        %v253 = vld [vmem:[#allocation5 + $0x40] sm:$0xff]
        %v254 = vld [vmem:[#allocation5 + $0x48] sm:$0xff]
        %v255 = vld [vmem:[#allocation5 + $0x50] sm:$0xff]
        %v256 = vld [vmem:[#allocation5 + $0x58] sm:$0xff]
        %v257 = vld [vmem:[#allocation5 + $0x60] sm:$0xff]
        %v258 = vld [vmem:[#allocation5 + $0x68] sm:$0xff]
        %v259 = vld [vmem:[#allocation5 + $0x70] sm:$0xff]
        %v260 = vld [vmem:[#allocation5 + $0x78] sm:$0xff]
        %v261 = vld [vmem:[#allocation5 + $0x80] sm:$0xff]
        %v262 = vld [vmem:[#allocation5 + $0x88] sm:$0xff]
        %v263 = vld [vmem:[#allocation5 + $0x90] sm:$0xff]
        %v264 = vld [vmem:[#allocation5 + $0x98] sm:$0xff]
        %v265 = vld [vmem:[#allocation5 + $0xa0] sm:$0xff]
        %v266 = vld [vmem:[#allocation5 + $0xa8] sm:$0xff]
        %v267 = vld [vmem:[#allocation5 + $0xb0] sm:$0xff]
        %v268 = vld [vmem:[#allocation5 + $0xb8] sm:$0xff]
        %v293 = vunpack.c.l.b16 %v245
        %v294 = vunpack.c.h.b16 %v245
        %v295 = vunpack.c.l.b16 %v246
        %v296 = vunpack.c.h.b16 %v246
        %v297 = vunpack.c.l.b16 %v247
        %v298 = vunpack.c.h.b16 %v247
        %v299 = vunpack.c.l.b16 %v248
        %v300 = vunpack.c.h.b16 %v248
        %v301 = vunpack.c.l.b16 %v249
        %v302 = vunpack.c.h.b16 %v249
        %v303 = vunpack.c.l.b16 %v250
        %v304 = vunpack.c.h.b16 %v250
        %v305 = vunpack.c.l.b16 %v251
        %v306 = vunpack.c.h.b16 %v251
        %v307 = vunpack.c.l.b16 %v252
        %v308 = vunpack.c.h.b16 %v252
        %v309 = vunpack.c.l.b16 %v253
        %v310 = vunpack.c.h.b16 %v253
        %v311 = vunpack.c.l.b16 %v254
        %v312 = vunpack.c.h.b16 %v254
        %v313 = vunpack.c.l.b16 %v255
        %v314 = vunpack.c.h.b16 %v255
        %v315 = vunpack.c.l.b16 %v256
        %v316 = vunpack.c.h.b16 %v256
        %v317 = vunpack.c.l.b16 %v257
        %v318 = vunpack.c.h.b16 %v257
        %v319 = vunpack.c.l.b16 %v258
        %v320 = vunpack.c.h.b16 %v258
        %v321 = vunpack.c.l.b16 %v259
        %v322 = vunpack.c.h.b16 %v259
        %v323 = vunpack.c.l.b16 %v260
        %v324 = vunpack.c.h.b16 %v260
        %v325 = vunpack.c.l.b16 %v261
        %v326 = vunpack.c.h.b16 %v261
        %v327 = vunpack.c.l.b16 %v262
        %v328 = vunpack.c.h.b16 %v262
        %v329 = vunpack.c.l.b16 %v263
        %v330 = vunpack.c.h.b16 %v263
        %v331 = vunpack.c.l.b16 %v264
        %v332 = vunpack.c.h.b16 %v264
        %v333 = vunpack.c.l.b16 %v265
        %v334 = vunpack.c.h.b16 %v265
        %v335 = vunpack.c.l.b16 %v266
        %v336 = vunpack.c.h.b16 %v266
        %v337 = vunpack.c.l.b16 %v267
        %v338 = vunpack.c.h.b16 %v267
        %v339 = vunpack.c.l.b16 %v268
        %v340 = vunpack.c.h.b16 %v268
        %v341 = vpack.c.b16 %v299, %v293
        %v342 = vpack.c.b16 %v300, %v294
        %v343 = vpack.c.b16 %v301, %v295
        %v344 = vpack.c.b16 %v302, %v296
        %v345 = vpack.c.b16 %v303, %v297
        %v346 = vpack.c.b16 %v304, %v298
        %v347 = vpack.c.b16 %v311, %v305
        %v348 = vpack.c.b16 %v312, %v306
        %v349 = vpack.c.b16 %v313, %v307
        %v350 = vpack.c.b16 %v314, %v308
        %v351 = vpack.c.b16 %v315, %v309
        %v352 = vpack.c.b16 %v316, %v310
        %v353 = vpack.c.b16 %v323, %v317
        %v354 = vpack.c.b16 %v324, %v318
        %v355 = vpack.c.b16 %v325, %v319
        %v356 = vpack.c.b16 %v326, %v320
        %v357 = vpack.c.b16 %v327, %v321
        %v358 = vpack.c.b16 %v328, %v322
        %v359 = vpack.c.b16 %v335, %v329
        %v360 = vpack.c.b16 %v336, %v330
        %v361 = vpack.c.b16 %v337, %v331
        %v362 = vpack.c.b16 %v338, %v332
        %v363 = vpack.c.b16 %v339, %v333
        %v364 = vpack.c.b16 %v340, %v334
        %vm389 = vcmask 523264
        %v391 = vsel %vm389, %v244, 0
        %393 = vmatprep.subr.bf16.mxu0 %v342
        %394 = vmatpush1.bf16.msra.mxu0 %v341
        %395 = vmatprep.subr.bf16.mxu0 %v348
        %396 = vmatpush1.bf16.msra.mxu0 %v347
        %397 = vmatprep.subr.bf16.mxu0 %v354
        %398 = vmatpush1.bf16.msra.mxu0 %v353
        %399 = vmatprep.subr.bf16.mxu0 %v360
        %400 = vmatpush1.bf16.msra.mxu0 %v359
        %401 = vmatprep.subr.bf16.mxu0 0
        %402 = vmatpush1.bf16.msra.mxu0 0
        %403 = vmatprep.subr.bf16.mxu0 0
        %404 = vmatpush1.bf16.msra.mxu0 0
        %405 = vmatprep.subr.bf16.mxu0 0
        %406 = vmatpush1.bf16.msra.mxu0 0
        %407 = vmatprep.subr.bf16.mxu0 0
        %408 = vmatpush1.bf16.msra.mxu0 0
        %409 = vmatprep.subr.bf16.mxu0 0
        %410 = vmatpush1.bf16.msra.mxu0 0
        %411 = vmatprep.subr.bf16.mxu0 0
        %412 = vmatpush1.bf16.msra.mxu0 0
        %413 = vmatprep.subr.bf16.mxu0 0
        %414 = vmatpush1.bf16.msra.mxu0 0
        %415 = vmatprep.subr.bf16.mxu0 0
        %416 = vmatpush1.bf16.msra.mxu0 0
        %417 = vmatprep.subr.bf16.mxu0 0
        %418 = vmatpush1.bf16.msra.mxu0 0
        %419 = vmatprep.subr.bf16.mxu0 0
        %420 = vmatpush1.bf16.msra.mxu0 0
        %421 = vmatprep.subr.bf16.mxu0 0
        %422 = vmatpush1.bf16.msra.mxu0 0
        %423 = vmatprep.subr.bf16.mxu0 0
        %424 = vmatpush1.bf16.msra.mxu0 0
        %425 = vmatprep.mubr.bf16.mxu0 0
        %426 = vmatmul.mubr.bf16.gmra.mrb[0].mxu0 %v391
        %v427 = vpop.f32.mrb[0].mxu0
        %v428 = vadd.f32 0.0, %v427
        %v429 = vpop.f32.mrb[0].mxu0
        %v430 = vadd.f32 0.0, %v429
        %v431 = vpop.f32.mrb[0].mxu0
        %v432 = vpop.f32.mrb[0].mxu0
        %433 = vdwg.mxu0
        %434 = vmatprep.subr.bf16.mxu0 %v344
        %435 = vmatpush1.bf16.msra.mxu0 %v343
        %436 = vmatprep.subr.bf16.mxu0 %v350
        %437 = vmatpush1.bf16.msra.mxu0 %v349
        %438 = vmatprep.subr.bf16.mxu0 %v356
        %439 = vmatpush1.bf16.msra.mxu0 %v355
        %440 = vmatprep.subr.bf16.mxu0 %v362
        %441 = vmatpush1.bf16.msra.mxu0 %v361
        %442 = vmatprep.subr.bf16.mxu0 0
        %443 = vmatpush1.bf16.msra.mxu0 0
        %444 = vmatprep.subr.bf16.mxu0 0
        %445 = vmatpush1.bf16.msra.mxu0 0
        %446 = vmatprep.subr.bf16.mxu0 0
        %447 = vmatpush1.bf16.msra.mxu0 0
        %448 = vmatprep.subr.bf16.mxu0 0
        %449 = vmatpush1.bf16.msra.mxu0 0
        %450 = vmatprep.subr.bf16.mxu0 0
        %451 = vmatpush1.bf16.msra.mxu0 0
        %452 = vmatprep.subr.bf16.mxu0 0
        %453 = vmatpush1.bf16.msra.mxu0 0
        %454 = vmatprep.subr.bf16.mxu0 0
        %455 = vmatpush1.bf16.msra.mxu0 0
        %456 = vmatprep.subr.bf16.mxu0 0
        %457 = vmatpush1.bf16.msra.mxu0 0
        %458 = vmatprep.subr.bf16.mxu0 0
        %459 = vmatpush1.bf16.msra.mxu0 0
        %460 = vmatprep.subr.bf16.mxu0 0
        %461 = vmatpush1.bf16.msra.mxu0 0
        %462 = vmatprep.subr.bf16.mxu0 0
        %463 = vmatpush1.bf16.msra.mxu0 0
        %464 = vmatprep.subr.bf16.mxu0 0
        %465 = vmatpush1.bf16.msra.mxu0 0
        %466 = vmatprep.mubr.bf16.mxu0 0
        %467 = vmatmul.mubr.bf16.gmra.mrb[0].mxu0 %v391
        %v468 = vpop.f32.mrb[0].mxu0
        %v469 = vadd.f32 0.0, %v468
        %v470 = vpop.f32.mrb[0].mxu0
        %v471 = vadd.f32 0.0, %v470
        %v472 = vpop.f32.mrb[0].mxu0
        %v473 = vpop.f32.mrb[0].mxu0
        %474 = vdwg.mxu0
        %475 = vmatprep.subr.bf16.mxu0 %v346
        %476 = vmatpush1.bf16.msra.mxu0 %v345
        %477 = vmatprep.subr.bf16.mxu0 %v352
        %478 = vmatpush1.bf16.msra.mxu0 %v351
        %479 = vmatprep.subr.bf16.mxu0 %v358
        %480 = vmatpush1.bf16.msra.mxu0 %v357
        %481 = vmatprep.subr.bf16.mxu0 %v364
        %482 = vmatpush1.bf16.msra.mxu0 %v363
        %483 = vmatprep.subr.bf16.mxu0 0
        %484 = vmatpush1.bf16.msra.mxu0 0
        %485 = vmatprep.subr.bf16.mxu0 0
        %486 = vmatpush1.bf16.msra.mxu0 0
        %487 = vmatprep.subr.bf16.mxu0 0
        %488 = vmatpush1.bf16.msra.mxu0 0
        %489 = vmatprep.subr.bf16.mxu0 0
        %490 = vmatpush1.bf16.msra.mxu0 0
        %491 = vmatprep.subr.bf16.mxu0 0
        %492 = vmatpush1.bf16.msra.mxu0 0
        %493 = vmatprep.subr.bf16.mxu0 0
        %494 = vmatpush1.bf16.msra.mxu0 0
        %495 = vmatprep.subr.bf16.mxu0 0
        %496 = vmatpush1.bf16.msra.mxu0 0
        %497 = vmatprep.subr.bf16.mxu0 0
        %498 = vmatpush1.bf16.msra.mxu0 0
        %499 = vmatprep.subr.bf16.mxu0 0
        %500 = vmatpush1.bf16.msra.mxu0 0
        %501 = vmatprep.subr.bf16.mxu0 0
        %502 = vmatpush1.bf16.msra.mxu0 0
        %503 = vmatprep.subr.bf16.mxu0 0
        %504 = vmatpush1.bf16.msra.mxu0 0
        %505 = vmatprep.subr.bf16.mxu0 0
        %506 = vmatpush1.bf16.msra.mxu0 0
        %507 = vmatprep.mubr.bf16.mxu0 0
        %508 = vmatmul.mubr.bf16.gmra.mrb[0].mxu0 %v391
        %v509 = vpop.f32.mrb[0].mxu0
        %v510 = vadd.f32 0.0, %v509
        %v511 = vpop.f32.mrb[0].mxu0
        %v512 = vadd.f32 0.0, %v511
        %v513 = vpop.f32.mrb[0].mxu0
        %v514 = vpop.f32.mrb[0].mxu0
        %515 = vdwg.mxu0
        %v516 = vpack.c.bf16 %v428, %v428
        %v517 = vpack.c.bf16 %v430, %v430
        %v518 = vpack.c.bf16 %v469, %v469
        %v519 = vpack.c.bf16 %v471, %v471
        %v520 = vpack.c.bf16 %v510, %v510
        %v521 = vpack.c.bf16 %v512, %v512
        %v522 = vld [vmem:[#allocation7] sm:$0xf]
        %v523 = vld [vmem:[#allocation7 + $0x4] sm:$0xf]
        %v524 = vld [vmem:[#allocation7 + $0x8] sm:$0xf]
        %v525 = vld [vmem:[#allocation7 + $0xc] sm:$0xf]
        %v526 = vld [vmem:[#allocation7 + $0x10] sm:$0xf]
        %v527 = vld [vmem:[#allocation7 + $0x14] sm:$0xf]
        %v528 = vld [vmem:[#allocation7 + $0x18] sm:$0xf]
        %v529 = vld [vmem:[#allocation7 + $0x1c] sm:$0xf]
        %v530 = vld [vmem:[#allocation7 + $0x20] sm:$0xf]
        %v531 = vld [vmem:[#allocation7 + $0x24] sm:$0xf]
        %v532 = vld [vmem:[#allocation7 + $0x28] sm:$0xf]
        %v533 = vld [vmem:[#allocation7 + $0x2c] sm:$0xf]
        %v534 = vld [vmem:[#allocation7 + $0x30] sm:$0xf]
        %v535 = vld [vmem:[#allocation7 + $0x34] sm:$0xf]
        %v536 = vld [vmem:[#allocation7 + $0x38] sm:$0xf]
        %v537 = vld [vmem:[#allocation7 + $0x3c] sm:$0xf]
        %v538 = vld [vmem:[#allocation7 + $0x40] sm:$0xf]
        %v539 = vld [vmem:[#allocation7 + $0x44] sm:$0xf]
        %v540 = vld [vmem:[#allocation7 + $0x48] sm:$0xf]
        %v541 = vld [vmem:[#allocation7 + $0x4c] sm:$0xf]
        %v542 = vld [vmem:[#allocation7 + $0x50] sm:$0xf]
        %v543 = vld [vmem:[#allocation7 + $0x54] sm:$0xf]
        %v544 = vld [vmem:[#allocation7 + $0x58] sm:$0xf]
        %v545 = vld [vmem:[#allocation7 + $0x5c] sm:$0xf]
        %v546 = vld [vmem:[#allocation7 + $0x60] sm:$0xf]
        %v547 = vld [vmem:[#allocation7 + $0x64] sm:$0xf]
        %v548 = vld [vmem:[#allocation7 + $0x68] sm:$0xf]
        %v549 = vld [vmem:[#allocation7 + $0x6c] sm:$0xf]
        %v550 = vld [vmem:[#allocation7 + $0x70] sm:$0xf]
        %v551 = vld [vmem:[#allocation7 + $0x74] sm:$0xf]
        %v552 = vld [vmem:[#allocation7 + $0x78] sm:$0xf]
        %v553 = vld [vmem:[#allocation7 + $0x7c] sm:$0xf]
        %v554 = vld [vmem:[#allocation7 + $0x80] sm:$0xf]
        %v555 = vld [vmem:[#allocation7 + $0x84] sm:$0xf]
        %v556 = vld [vmem:[#allocation7 + $0x88] sm:$0xf]
        %v557 = vld [vmem:[#allocation7 + $0x8c] sm:$0xf]
        %v558 = vld [vmem:[#allocation7 + $0x90] sm:$0xf]
        %v559 = vld [vmem:[#allocation7 + $0x94] sm:$0xf]
        %v560 = vld [vmem:[#allocation7 + $0x98] sm:$0xf]
        %v561 = vld [vmem:[#allocation7 + $0x9c] sm:$0xf]
        %v562 = vld [vmem:[#allocation7 + $0xa0] sm:$0xf]
        %v563 = vld [vmem:[#allocation7 + $0xa4] sm:$0xf]
        %v564 = vld [vmem:[#allocation7 + $0xa8] sm:$0xf]
        %v565 = vld [vmem:[#allocation7 + $0xac] sm:$0xf]
        %v566 = vld [vmem:[#allocation7 + $0xb0] sm:$0xf]
        %v567 = vld [vmem:[#allocation7 + $0xb4] sm:$0xf]
        %v568 = vld [vmem:[#allocation7 + $0xb8] sm:$0xf]
        %v569 = vld [vmem:[#allocation7 + $0xbc] sm:$0xf]
        %v570 = vld [vmem:[#allocation7 + $0xc0] sm:$0xf]
        %v571 = vld [vmem:[#allocation7 + $0xc4] sm:$0xf]
        %v572 = vld [vmem:[#allocation7 + $0xc8] sm:$0xf]
        %v573 = vld [vmem:[#allocation7 + $0xcc] sm:$0xf]
        %v574 = vld [vmem:[#allocation7 + $0xd0] sm:$0xf]
        %v575 = vld [vmem:[#allocation7 + $0xd4] sm:$0xf]
        %v576 = vld [vmem:[#allocation7 + $0xd8] sm:$0xf]
        %v577 = vld [vmem:[#allocation7 + $0xdc] sm:$0xf]
        %v578 = vld [vmem:[#allocation7 + $0xe0] sm:$0xf]
        %v579 = vld [vmem:[#allocation7 + $0xe4] sm:$0xf]
        %v580 = vld [vmem:[#allocation7 + $0xe8] sm:$0xf]
        %v581 = vld [vmem:[#allocation7 + $0xec] sm:$0xf]
        %v582 = vld [vmem:[#allocation7 + $0xf0] sm:$0xf]
        %v583 = vld [vmem:[#allocation7 + $0xf4] sm:$0xf]
        %v584 = vld [vmem:[#allocation7 + $0xf8] sm:$0xf]
        %v585 = vld [vmem:[#allocation7 + $0xfc] sm:$0xf]
        %v586 = vld [vmem:[#allocation7 + $0x100] sm:$0xf]
        %v587 = vld [vmem:[#allocation7 + $0x104] sm:$0xf]
        %v588 = vld [vmem:[#allocation7 + $0x108] sm:$0xf]
        %v589 = vld [vmem:[#allocation7 + $0x10c] sm:$0xf]
        %v590 = vld [vmem:[#allocation7 + $0x110] sm:$0xf]
        %v591 = vld [vmem:[#allocation7 + $0x114] sm:$0xf]
        %v592 = vld [vmem:[#allocation7 + $0x118] sm:$0xf]
        %v593 = vld [vmem:[#allocation7 + $0x11c] sm:$0xf]
        %v594 = vld [vmem:[#allocation7 + $0x120] sm:$0xf]
        %v595 = vld [vmem:[#allocation7 + $0x124] sm:$0xf]
        %v596 = vld [vmem:[#allocation7 + $0x128] sm:$0xf]
        %v597 = vld [vmem:[#allocation7 + $0x12c] sm:$0xf]
        %v598 = vld [vmem:[#allocation7 + $0x130] sm:$0xf]
        %v599 = vld [vmem:[#allocation7 + $0x134] sm:$0xf]
        %v600 = vld [vmem:[#allocation7 + $0x138] sm:$0xf]
        %v601 = vld [vmem:[#allocation7 + $0x13c] sm:$0xf]
        %v602 = vld [vmem:[#allocation7 + $0x140] sm:$0xf]
        %v603 = vld [vmem:[#allocation7 + $0x144] sm:$0xf]
        %v604 = vld [vmem:[#allocation7 + $0x148] sm:$0xf]
        %v605 = vld [vmem:[#allocation7 + $0x14c] sm:$0xf]
        %v606 = vld [vmem:[#allocation7 + $0x150] sm:$0xf]
        %v607 = vld [vmem:[#allocation7 + $0x154] sm:$0xf]
        %v608 = vld [vmem:[#allocation7 + $0x158] sm:$0xf]
        %v609 = vld [vmem:[#allocation7 + $0x15c] sm:$0xf]
        %v610 = vld [vmem:[#allocation7 + $0x160] sm:$0xf]
        %v611 = vld [vmem:[#allocation7 + $0x164] sm:$0xf]
        %v612 = vld [vmem:[#allocation7 + $0x168] sm:$0xf]
        %v613 = vld [vmem:[#allocation7 + $0x16c] sm:$0xf]
        %v614 = vld [vmem:[#allocation7 + $0x170] sm:$0xf]
        %v615 = vld [vmem:[#allocation7 + $0x174] sm:$0xf]
        %v616 = vld [vmem:[#allocation7 + $0x178] sm:$0xf]
        %v617 = vld [vmem:[#allocation7 + $0x17c] sm:$0xf]
        %v618 = vld [vmem:[%s3] sm:$0x1]
        %v620 = vlaneseq
        %v621 = vshrl.u32 %v620, 7
        %v622 = vsub.s32 0, %v621
        %v623 = vrot.slane %v618, %v622
        %v721 = vunpack.c.l.b16 %v522
        %v722 = vunpack.c.l.b16 %v523
        %v723 = vunpack.c.l.b16 %v524
        %v724 = vunpack.c.l.b16 %v525
        %v725 = vunpack.c.l.b16 %v526
        %v726 = vunpack.c.l.b16 %v527
        %v727 = vunpack.c.l.b16 %v528
        %v728 = vunpack.c.l.b16 %v529
        %v729 = vunpack.c.l.b16 %v530
        %v730 = vunpack.c.l.b16 %v531
        %v731 = vunpack.c.l.b16 %v532
        %v732 = vunpack.c.l.b16 %v533
        %v733 = vunpack.c.l.b16 %v534
        %v734 = vunpack.c.l.b16 %v535
        %v735 = vunpack.c.l.b16 %v536
        %v736 = vunpack.c.l.b16 %v537
        %v737 = vunpack.c.l.b16 %v538
        %v738 = vunpack.c.l.b16 %v539
        %v739 = vunpack.c.l.b16 %v540
        %v740 = vunpack.c.l.b16 %v541
        %v741 = vunpack.c.l.b16 %v542
        %v742 = vunpack.c.l.b16 %v543
        %v743 = vunpack.c.l.b16 %v544
        %v744 = vunpack.c.l.b16 %v545
        %v745 = vunpack.c.l.b16 %v546
        %v746 = vunpack.c.l.b16 %v547
        %v747 = vunpack.c.l.b16 %v548
        %v748 = vunpack.c.l.b16 %v549
        %v749 = vunpack.c.l.b16 %v550
        %v750 = vunpack.c.l.b16 %v551
        %v751 = vunpack.c.l.b16 %v552
        %v752 = vunpack.c.l.b16 %v553
        %v753 = vunpack.c.l.b16 %v554
        %v754 = vunpack.c.l.b16 %v555
        %v755 = vunpack.c.l.b16 %v556
        %v756 = vunpack.c.l.b16 %v557
        %v757 = vunpack.c.l.b16 %v558
        %v758 = vunpack.c.l.b16 %v559
        %v759 = vunpack.c.l.b16 %v560
        %v760 = vunpack.c.l.b16 %v561
        %v761 = vunpack.c.l.b16 %v562
        %v762 = vunpack.c.l.b16 %v563
        %v763 = vunpack.c.l.b16 %v564
        %v764 = vunpack.c.l.b16 %v565
        %v765 = vunpack.c.l.b16 %v566
        %v766 = vunpack.c.l.b16 %v567
        %v767 = vunpack.c.l.b16 %v568
        %v768 = vunpack.c.l.b16 %v569
        %v769 = vunpack.c.l.b16 %v570
        %v770 = vunpack.c.l.b16 %v571
        %v771 = vunpack.c.l.b16 %v572
        %v772 = vunpack.c.l.b16 %v573
        %v773 = vunpack.c.l.b16 %v574
        %v774 = vunpack.c.l.b16 %v575
        %v775 = vunpack.c.l.b16 %v576
        %v776 = vunpack.c.l.b16 %v577
        %v777 = vunpack.c.l.b16 %v578
        %v778 = vunpack.c.l.b16 %v579
        %v779 = vunpack.c.l.b16 %v580
        %v780 = vunpack.c.l.b16 %v581
        %v781 = vunpack.c.l.b16 %v582
        %v782 = vunpack.c.l.b16 %v583
        %v783 = vunpack.c.l.b16 %v584
        %v784 = vunpack.c.l.b16 %v585
        %v785 = vunpack.c.l.b16 %v586
        %v786 = vunpack.c.l.b16 %v587
        %v787 = vunpack.c.l.b16 %v588
        %v788 = vunpack.c.l.b16 %v589
        %v789 = vunpack.c.l.b16 %v590
        %v790 = vunpack.c.l.b16 %v591
        %v791 = vunpack.c.l.b16 %v592
        %v792 = vunpack.c.l.b16 %v593
        %v793 = vunpack.c.l.b16 %v594
        %v794 = vunpack.c.l.b16 %v595
        %v795 = vunpack.c.l.b16 %v596
        %v796 = vunpack.c.l.b16 %v597
        %v797 = vunpack.c.l.b16 %v598
        %v798 = vunpack.c.l.b16 %v599
        %v799 = vunpack.c.l.b16 %v600
        %v800 = vunpack.c.l.b16 %v601
        %v801 = vunpack.c.l.b16 %v602
        %v802 = vunpack.c.l.b16 %v603
        %v803 = vunpack.c.l.b16 %v604
        %v804 = vunpack.c.l.b16 %v605
        %v805 = vunpack.c.l.b16 %v606
        %v806 = vunpack.c.l.b16 %v607
        %v807 = vunpack.c.l.b16 %v608
        %v808 = vunpack.c.l.b16 %v609
        %v809 = vunpack.c.l.b16 %v610
        %v810 = vunpack.c.l.b16 %v611
        %v811 = vunpack.c.l.b16 %v612
        %v812 = vunpack.c.l.b16 %v613
        %v813 = vunpack.c.l.b16 %v614
        %v814 = vunpack.c.l.b16 %v615
        %v815 = vunpack.c.l.b16 %v616
        %v816 = vunpack.c.l.b16 %v617
        %v817 = vpack.c.b16 %v722, %v721
        %v818 = vpack.c.b16 %v724, %v723
        %v819 = vpack.c.b16 %v726, %v725
        %v820 = vpack.c.b16 %v728, %v727
        %v821 = vpack.c.b16 %v730, %v729
        %v822 = vpack.c.b16 %v732, %v731
        %v823 = vpack.c.b16 %v734, %v733
        %v824 = vpack.c.b16 %v736, %v735
        %v825 = vpack.c.b16 %v738, %v737
        %v826 = vpack.c.b16 %v740, %v739
        %v827 = vpack.c.b16 %v742, %v741
        %v828 = vpack.c.b16 %v744, %v743
        %v829 = vpack.c.b16 %v746, %v745
        %v830 = vpack.c.b16 %v748, %v747
        %v831 = vpack.c.b16 %v750, %v749
        %v832 = vpack.c.b16 %v752, %v751
        %v833 = vpack.c.b16 %v754, %v753
        %v834 = vpack.c.b16 %v756, %v755
        %v835 = vpack.c.b16 %v758, %v757
        %v836 = vpack.c.b16 %v760, %v759
        %v837 = vpack.c.b16 %v762, %v761
        %v838 = vpack.c.b16 %v764, %v763
        %v839 = vpack.c.b16 %v766, %v765
        %v840 = vpack.c.b16 %v768, %v767
        %v841 = vpack.c.b16 %v770, %v769
        %v842 = vpack.c.b16 %v772, %v771
        %v843 = vpack.c.b16 %v774, %v773
        %v844 = vpack.c.b16 %v776, %v775
        %v845 = vpack.c.b16 %v778, %v777
        %v846 = vpack.c.b16 %v780, %v779
        %v847 = vpack.c.b16 %v782, %v781
        %v848 = vpack.c.b16 %v784, %v783
        %v849 = vpack.c.b16 %v786, %v785
        %v850 = vpack.c.b16 %v788, %v787
        %v851 = vpack.c.b16 %v790, %v789
        %v852 = vpack.c.b16 %v792, %v791
        %v853 = vpack.c.b16 %v794, %v793
        %v854 = vpack.c.b16 %v796, %v795
        %v855 = vpack.c.b16 %v798, %v797
        %v856 = vpack.c.b16 %v800, %v799
        %v857 = vpack.c.b16 %v802, %v801
        %v858 = vpack.c.b16 %v804, %v803
        %v859 = vpack.c.b16 %v806, %v805
        %v860 = vpack.c.b16 %v808, %v807
        %v861 = vpack.c.b16 %v810, %v809
        %v862 = vpack.c.b16 %v812, %v811
        %v863 = vpack.c.b16 %v814, %v813
        %v864 = vpack.c.b16 %v816, %v815
        %913 = vmatprep.subr.bf16.mxu0 0
        %914 = vmatpush1.bf16.msra.mxu0 %v817
        %915 = vmatprep.subr.bf16.mxu0 0
        %916 = vmatpush1.bf16.msra.mxu0 %v818
        %917 = vmatprep.subr.bf16.mxu0 0
        %918 = vmatpush1.bf16.msra.mxu0 %v819
        %919 = vmatprep.subr.bf16.mxu0 0
        %920 = vmatpush1.bf16.msra.mxu0 %v820
        %921 = vmatprep.subr.bf16.mxu0 0
        %922 = vmatpush1.bf16.msra.mxu0 %v821
        %923 = vmatprep.subr.bf16.mxu0 0
        %924 = vmatpush1.bf16.msra.mxu0 %v822
        %925 = vmatprep.subr.bf16.mxu0 0
        %926 = vmatpush1.bf16.msra.mxu0 %v823
        %927 = vmatprep.subr.bf16.mxu0 0
        %928 = vmatpush1.bf16.msra.mxu0 %v824
        %929 = vmatprep.subr.bf16.mxu0 0
        %930 = vmatpush1.bf16.msra.mxu0 %v825
        %931 = vmatprep.subr.bf16.mxu0 0
        %932 = vmatpush1.bf16.msra.mxu0 %v826
        %933 = vmatprep.subr.bf16.mxu0 0
        %934 = vmatpush1.bf16.msra.mxu0 %v827
        %935 = vmatprep.subr.bf16.mxu0 0
        %936 = vmatpush1.bf16.msra.mxu0 %v828
        %937 = vmatprep.subr.bf16.mxu0 0
        %938 = vmatpush1.bf16.msra.mxu0 %v829
        %939 = vmatprep.subr.bf16.mxu0 0
        %940 = vmatpush1.bf16.msra.mxu0 %v830
        %941 = vmatprep.subr.bf16.mxu0 0
        %942 = vmatpush1.bf16.msra.mxu0 %v831
        %943 = vmatprep.subr.bf16.mxu0 0
        %944 = vmatpush1.bf16.msra.mxu0 %v832
        %945 = vmatprep.mubr.bf16.mxu0 %v517
        %946 = vmatmul.mubr.bf16.gmra.mrb[0].mxu0 %v516
        %v947 = vpop.f32.mrb[0].mxu0
        %v948 = vadd.f32 %v623, %v947
        %v949 = vpop.f32.mrb[0].mxu0
        %v950 = vpop.f32.mrb[0].mxu0
        %v951 = vpop.f32.mrb[0].mxu0
        %952 = vdwg.mxu0
        %953 = vmatprep.subr.bf16.mxu0 0
        %954 = vmatpush1.bf16.msra.mxu0 %v833
        %955 = vmatprep.subr.bf16.mxu0 0
        %956 = vmatpush1.bf16.msra.mxu0 %v834
        %957 = vmatprep.subr.bf16.mxu0 0
        %958 = vmatpush1.bf16.msra.mxu0 %v835
        %959 = vmatprep.subr.bf16.mxu0 0
        %960 = vmatpush1.bf16.msra.mxu0 %v836
        %961 = vmatprep.subr.bf16.mxu0 0
        %962 = vmatpush1.bf16.msra.mxu0 %v837
        %963 = vmatprep.subr.bf16.mxu0 0
        %964 = vmatpush1.bf16.msra.mxu0 %v838
        %965 = vmatprep.subr.bf16.mxu0 0
        %966 = vmatpush1.bf16.msra.mxu0 %v839
        %967 = vmatprep.subr.bf16.mxu0 0
        %968 = vmatpush1.bf16.msra.mxu0 %v840
        %969 = vmatprep.subr.bf16.mxu0 0
        %970 = vmatpush1.bf16.msra.mxu0 %v841
        %971 = vmatprep.subr.bf16.mxu0 0
        %972 = vmatpush1.bf16.msra.mxu0 %v842
        %973 = vmatprep.subr.bf16.mxu0 0
        %974 = vmatpush1.bf16.msra.mxu0 %v843
        %975 = vmatprep.subr.bf16.mxu0 0
        %976 = vmatpush1.bf16.msra.mxu0 %v844
        %977 = vmatprep.subr.bf16.mxu0 0
        %978 = vmatpush1.bf16.msra.mxu0 %v845
        %979 = vmatprep.subr.bf16.mxu0 0
        %980 = vmatpush1.bf16.msra.mxu0 %v846
        %981 = vmatprep.subr.bf16.mxu0 0
        %982 = vmatpush1.bf16.msra.mxu0 %v847
        %983 = vmatprep.subr.bf16.mxu0 0
        %984 = vmatpush1.bf16.msra.mxu0 %v848
        %985 = vmatprep.mubr.bf16.mxu0 %v519
        %986 = vmatmul.mubr.bf16.gmra.mrb[0].mxu0 %v518
        %v987 = vpop.f32.mrb[0].mxu0
        %v988 = vadd.f32 %v948, %v987
        %v989 = vpop.f32.mrb[0].mxu0
        %v990 = vpop.f32.mrb[0].mxu0
        %v991 = vpop.f32.mrb[0].mxu0
        %992 = vdwg.mxu0
        %993 = vmatprep.subr.bf16.mxu0 0
        %994 = vmatpush1.bf16.msra.mxu0 %v849
        %995 = vmatprep.subr.bf16.mxu0 0
        %996 = vmatpush1.bf16.msra.mxu0 %v850
        %997 = vmatprep.subr.bf16.mxu0 0
        %998 = vmatpush1.bf16.msra.mxu0 %v851
        %999 = vmatprep.subr.bf16.mxu0 0
        %1000 = vmatpush1.bf16.msra.mxu0 %v852
        %1001 = vmatprep.subr.bf16.mxu0 0
        %1002 = vmatpush1.bf16.msra.mxu0 %v853
        %1003 = vmatprep.subr.bf16.mxu0 0
        %1004 = vmatpush1.bf16.msra.mxu0 %v854
        %1005 = vmatprep.subr.bf16.mxu0 0
        %1006 = vmatpush1.bf16.msra.mxu0 %v855
        %1007 = vmatprep.subr.bf16.mxu0 0
        %1008 = vmatpush1.bf16.msra.mxu0 %v856
        %1009 = vmatprep.subr.bf16.mxu0 0
        %1010 = vmatpush1.bf16.msra.mxu0 %v857
        %1011 = vmatprep.subr.bf16.mxu0 0
        %1012 = vmatpush1.bf16.msra.mxu0 %v858
        %1013 = vmatprep.subr.bf16.mxu0 0
        %1014 = vmatpush1.bf16.msra.mxu0 %v859
        %1015 = vmatprep.subr.bf16.mxu0 0
        %1016 = vmatpush1.bf16.msra.mxu0 %v860
        %1017 = vmatprep.subr.bf16.mxu0 0
        %1018 = vmatpush1.bf16.msra.mxu0 %v861
        %1019 = vmatprep.subr.bf16.mxu0 0
        %1020 = vmatpush1.bf16.msra.mxu0 %v862
        %1021 = vmatprep.subr.bf16.mxu0 0
        %1022 = vmatpush1.bf16.msra.mxu0 %v863
        %1023 = vmatprep.subr.bf16.mxu0 0
        %1024 = vmatpush1.bf16.msra.mxu0 %v864
        %1025 = vmatprep.mubr.bf16.mxu0 %v521
        %1026 = vmatmul.mubr.bf16.gmra.mrb[0].mxu0 %v520
        %v1027 = vpop.f32.mrb[0].mxu0
        %v1028 = vadd.f32 %v988, %v1027
        %v1029 = vpop.f32.mrb[0].mxu0
        %v1030 = vpop.f32.mrb[0].mxu0
        %v1031 = vpop.f32.mrb[0].mxu0
        %1032 = vdwg.mxu0
        %1033 = vst [vmem:[%s241] sm:$0xff] %v1028
        %s1034 = sand.u32 %s119, 1
        %s1035 = scalar_lea.sflag [#allocation4], %s1034
        %s1036 = sand.u32 %s119, 1
        %s1037 = smul.addr %s1036, 8
        %s1038 = scalar_lea.vmem [#allocation8], %s1037
        // Predicated region
        $region49: #{tpu_custom_call.1} parent=35 // pred_check
          %p1039 = pneg %p129
        $region50: #{tpu_custom_call.1} parent=35 // pred_check_branch
          %1041 = sbr.rel (%p1039) target = $region52
        $region51: #{tpu_custom_call.1} parent=35 // pred_region
          %s1043 = ssub.s32 128, 128
          %1044 = vsyncadd %s1035, %s1043
          %s1045 = smul.addr %s22, 128
          %s1046 = scalar_lea.hbm %s4, %s1045
          %s1048 = sshll.u32 %s1038, 4
          %s1049 = int_to_ptr.vmem [resolvable:$true] %s1048
          %1051 = dma.vmem_to_hbm [thread:$0]  %s1049, 128, %s1046, %s1035
        $region52: #{tpu_custom_call.1} parent=35 // pred_fallthru
          _
      $region36: #{tpu_custom_call.1} parent=5 // pred_fallthru
        _
      %p1052 = scmp.le.s32.totalorder 2, %s17
      // Predicated region
      $region53: #{tpu_custom_call.1} parent=5 // pred_check
        %p1053 = pneg %p1052
      $region54: #{tpu_custom_call.1} parent=5 // pred_check_branch
        %1055 = sbr.rel (%p1053) target = $region56
      $region55: #{tpu_custom_call.1} parent=5 // pred_region
        %s1056 = ssub.s32 %s17, 2
        // Predicated region
        $region57: #{tpu_custom_call.1} parent=55 // pred_check
          %p1057 = pneg %p135
        $region58: #{tpu_custom_call.1} parent=55 // pred_check_branch
          %1059 = sbr.rel (%p1057) target = $region60
        $region59: #{tpu_custom_call.1} parent=55 // pred_region
          %s1060 = sand.u32 %s120, 1
          %s1061 = scalar_lea.sflag [#allocation4], %s1060
          %s1062 = sand.u32 %s120, 1
          %s1063 = smul.addr %s1062, 8
          %s1064 = scalar_lea.vmem [#allocation8], %s1063
          %1065 = dma.done %s1061, 128
        $region60: #{tpu_custom_call.1} parent=55 // pred_fallthru
          _
      $region56: #{tpu_custom_call.1} parent=5 // pred_fallthru
        _
    $region6: #{tpu_custom_call.1} parent=1 // loop_footer
      %s21 = sadd.s32 1, %s17
    $region7: #{tpu_custom_call.1} parent=1 // loop_footer_branch
      %16 = sbr.rel target = $region3
    $region8: #{tpu_custom_call.1} parent=1 // loop_exit
      _
    %1066 = vsyncpa [#allocation3], 1
    %s1067 = scalar_lea.sflag [#allocation3], 1
    %1068 = vsyncpa %s1067, 1
    %1069 = vsyncpa [#allocation6], 1
    %1070 = vsyncpa [#allocation4], 1
    %s1071 = scalar_lea.sflag [#allocation4], 1
    %1072 = vsyncpa %s1071, 1

</llo_original>
